<compile_context>
chip_gen: v7x
topology: tpu7x:2x2x1
jax: 0.10.0
libtpu: 0.0.40
codegen_flags: <defaults>
</compile_context>

<pallas_src>
import functools
import math

import jax
import jax.numpy as jnp
from jax.experimental import pallas as pl
from jax.experimental.pallas import tpu as pltpu


# ---------------------- in-kernel building blocks (f32) ----------------------

def _ln(x, g, b, eps=1e-5):
    mu = jnp.mean(x, axis=-1, keepdims=True)
    xc = x - mu
    var = jnp.mean(xc * xc, axis=-1, keepdims=True)
    return xc * jax.lax.rsqrt(var + eps) * g + b


def _gelu(x):
    # exact (erf) GELU — matches nn.GELU() / F.gelu default
    return 0.5 * x * (1.0 + jax.lax.erf(x * 0.7071067811865476))


def _mha_core(qp, kp, vp, num_heads):
    """Per-batch multi-head attention. qp (Sq,E), kp/vp (Sk,E) -> (Sq,E).

    Unrolled over heads (num_heads is small & static); each head is a static
    column slice of the fused projection output, so no transposes are needed.
    """
    E = qp.shape[-1]
    hd = E // num_heads
    scale = 1.0 / math.sqrt(hd)
    heads = []
    for h in range(num_heads):
        sl = slice(h * hd, (h + 1) * hd)
        qh = qp[:, sl] * scale
        kh = kp[:, sl]
        vh = vp[:, sl]
        # contract hd with hd directly -> no explicit K transpose
        s = jax.lax.dot_general(qh, kh, (((1,), (1,)), ((), ())),
                                preferred_element_type=jnp.float32)
        m = jnp.max(s, axis=-1, keepdims=True)
        p = jnp.exp(s - m)
        p = p * pl.reciprocal(jnp.sum(p, axis=-1, keepdims=True), approx=True)
        heads.append(jnp.dot(p, vh, preferred_element_type=jnp.float32))
    return jnp.concatenate(heads, axis=-1)


# ------------------------------ fused kernels --------------------------------

def _cross_layer_kernel(q_ref, kv_ref,
                        n1g_ref, n1b_ref, nkg_ref, nkb_ref,
                        wq_ref, bq_ref, wkv_ref, bkv_ref, wo_ref, bo_ref,
                        n2g_ref, n2b_ref,
                        w1_ref, b1_ref, w2_ref, b2_ref,
                        o_ref, *, num_heads):
    """CrossAttnLayer (norm_first=True, eval) for one batch element, fully fused."""
    qn = _ln(q_ref[...].astype(jnp.float32), n1g_ref[...], n1b_ref[...])
    kvn = _ln(kv_ref[...].astype(jnp.float32), nkg_ref[...], nkb_ref[...])
    E = qn.shape[-1]

    qp = jnp.dot(qn, wq_ref[...], preferred_element_type=jnp.float32) + bq_ref[...]
    kvp = jnp.dot(kvn, wkv_ref[...], preferred_element_type=jnp.float32) + bkv_ref[...]
    kp = kvp[:, :E]
    vp = kvp[:, E:]

    attn = _mha_core(qp, kp, vp, num_heads)
    attn = jnp.dot(attn, wo_ref[...], preferred_element_type=jnp.float32) + bo_ref[...]

    # residual adds the *normalized* q (exactly as in the reference forward)
    x = attn + qn
    xn = _ln(x, n2g_ref[...], n2b_ref[...])
    h = _gelu(jnp.dot(xn, w1_ref[...], preferred_element_type=jnp.float32) + b1_ref[...])
    ff = jnp.dot(h, w2_ref[...], preferred_element_type=jnp.float32) + b2_ref[...]
    # note: no residual around the FFN in the reference CrossAttnLayer
    o_ref[...] = ff.astype(o_ref.dtype)


def _encoder_layer_kernel(x_ref,
                          n1g_ref, n1b_ref,
                          wqkv_ref, bqkv_ref, wo_ref, bo_ref,
                          n2g_ref, n2b_ref,
                          w1_ref, b1_ref, w2_ref, b2_ref,
                          o_ref, *, num_heads):
    """nn.TransformerEncoderLayer (norm_first=True, gelu, eval) for one batch elem."""
    x = x_ref[...].astype(jnp.float32)
    E = x.shape[-1]

    xn = _ln(x, n1g_ref[...], n1b_ref[...])
    qkv = jnp.dot(xn, wqkv_ref[...], preferred_element_type=jnp.float32) + bqkv_ref[...]
    qp = qkv[:, :E]
    kp = qkv[:, E:2 * E]
    vp = qkv[:, 2 * E:]

    attn = _mha_core(qp, kp, vp, num_heads)
    attn = jnp.dot(attn, wo_ref[...], preferred_element_type=jnp.float32) + bo_ref[...]
    x = x + attn

    xn2 = _ln(x, n2g_ref[...], n2b_ref[...])
    h = _gelu(jnp.dot(xn2, w1_ref[...], preferred_element_type=jnp.float32) + b1_ref[...])
    ff = jnp.dot(h, w2_ref[...], preferred_element_type=jnp.float32) + b2_ref[...]
    o_ref[...] = (x + ff).astype(o_ref.dtype)


def _head_kernel(x_ref, g_ref, b_ref, w_ref, bo_ref, o_ref):
    """mean over sequence + LayerNorm + fc_out, fused."""
    x = x_ref[...].astype(jnp.float32)          # (B, S, E)
    pooled = jnp.mean(x, axis=1)                # (B, E)
    y = _ln(pooled, g_ref[...], b_ref[...])
    o_ref[...] = (jnp.dot(y, w_ref[...], preferred_element_type=jnp.float32)
                  + bo_ref[...]).astype(o_ref.dtype)


# ------------------------------ wrappers --------------------------------------

def _rep_spec(arr):
    """Full-array block replicated across the grid (weights: fetched once)."""
    shp = arr.shape
    return pl.BlockSpec(shp, lambda b, _s=shp: (0,) * len(_s))


def cross_attn_layer(p, q, kv, num_heads):
    B, Sq, E = q.shape
    Skv, Dk = kv.shape[1], kv.shape[2]
    weights = (p["norm1_g"], p["norm1_b"], p["normkv_g"], p["normkv_b"],
               p["Wq"], p["bq"], p["Wkv"], p["bkv"], p["Wo"], p["bo"],
               p["norm2_g"], p["norm2_b"],
               p["fc1_w"], p["fc1_b"], p["fc2_w"], p["fc2_b"])
    kern = functools.partial(_cross_layer_kernel, num_heads=num_heads)
    return pl.pallas_call(
        kern,
        out_shape=jax.ShapeDtypeStruct((B, Sq, E), q.dtype),
        grid=(B,),
        in_specs=[pl.BlockSpec((None, Sq, E), lambda b: (b, 0, 0)),
                  pl.BlockSpec((None, Skv, Dk), lambda b: (b, 0, 0))]
                 + [_rep_spec(w) for w in weights],
        out_specs=pl.BlockSpec((None, Sq, E), lambda b: (b, 0, 0)),
        compiler_params=pltpu.CompilerParams(dimension_semantics=("parallel",)),
    )(q, kv, *weights)


def encoder_layer(p, x, num_heads):
    B, S, E = x.shape
    weights = (p["norm1_g"], p["norm1_b"],
               p["Wqkv"], p["bqkv"], p["Wo"], p["bo"],
               p["norm2_g"], p["norm2_b"],
               p["fc1_w"], p["fc1_b"], p["fc2_w"], p["fc2_b"])
    kern = functools.partial(_encoder_layer_kernel, num_heads=num_heads)
    return pl.pallas_call(
        kern,
        out_shape=jax.ShapeDtypeStruct((B, S, E), x.dtype),
        grid=(B,),
        in_specs=[pl.BlockSpec((None, S, E), lambda b: (b, 0, 0))]
                 + [_rep_spec(w) for w in weights],
        out_specs=pl.BlockSpec((None, S, E), lambda b: (b, 0, 0)),
        compiler_params=pltpu.CompilerParams(dimension_semantics=("parallel",)),
    )(x, *weights)


def pooled_head(p, x):
    B, S, E = x.shape
    n_outs = p["fc_out_w"].shape[1]
    weights = (p["norm_out_g"], p["norm_out_b"], p["fc_out_w"], p["fc_out_b"])
    return pl.pallas_call(
        _head_kernel,
        out_shape=jax.ShapeDtypeStruct((B, n_outs), x.dtype),
        grid=(1,),
        in_specs=[pl.BlockSpec((B, S, E), lambda i: (0, 0, 0))]
                 + [_rep_spec(w) for w in weights],
        out_specs=pl.BlockSpec((B, n_outs), lambda i: (0, 0)),
    )(x, *weights)


def binding_x_forward(params, protein_emb, ligand_emb):
    x = cross_attn_layer(params["input_attn"], protein_emb, ligand_emb,
                         params["input_attn_heads"])
    for lp in params["encoder_layers"]:
        x = encoder_layer(lp, x, params["self_attn_heads"])
    return pooled_head(params, x)                      # (B, n_outs)


# ------------------------------ parameter init --------------------------------

def init_params(key, emb_dim, kvdim, n_layers, input_attn_heads, self_attn_heads,
                ff_scale, n_outs):
    ff_dim = emb_dim * ff_scale
    keys = iter(jax.random.split(key, 256))

    def w(shape, scale=0.02):
        return jax.random.normal(next(keys), shape, jnp.float32) * scale

    def zeros(shape):
        return jnp.zeros(shape, jnp.float32)

    def ones(shape):
        return jnp.ones(shape, jnp.float32)

    # Cross-attention layer: separate Wq, fused [Wk|Wv] (shared kv input)
    input_attn = dict(
        norm1_g=ones((1, emb_dim)), norm1_b=zeros((1, emb_dim)),
        normkv_g=ones((1, kvdim)), normkv_b=zeros((1, kvdim)),
        Wq=w((emb_dim, emb_dim)), bq=zeros((1, emb_dim)),
        Wkv=w((kvdim, 2 * emb_dim)), bkv=zeros((1, 2 * emb_dim)),
        Wo=w((emb_dim, emb_dim)), bo=zeros((1, emb_dim)),
        norm2_g=ones((1, emb_dim)), norm2_b=zeros((1, emb_dim)),
        fc1_w=w((emb_dim, ff_dim)), fc1_b=zeros((1, ff_dim)),
        fc2_w=w((ff_dim, emb_dim)), fc2_b=zeros((1, emb_dim)),
    )

    # Self-attention encoder layers: fused [Wq|Wk|Wv]
    encoder_layers = []
    for _ in range(n_layers):
        encoder_layers.append(dict(
            norm1_g=ones((1, emb_dim)), norm1_b=zeros((1, emb_dim)),
            Wqkv=w((emb_dim, 3 * emb_dim)), bqkv=zeros((1, 3 * emb_dim)),
            Wo=w((emb_dim, emb_dim)), bo=zeros((1, emb_dim)),
            norm2_g=ones((1, emb_dim)), norm2_b=zeros((1, emb_dim)),
            fc1_w=w((emb_dim, ff_dim)), fc1_b=zeros((1, ff_dim)),
            fc2_w=w((ff_dim, emb_dim)), fc2_b=zeros((1, emb_dim)),
        ))

    return dict(
        input_attn=input_attn,
        encoder_layers=encoder_layers,
        input_attn_heads=input_attn_heads,
        self_attn_heads=self_attn_heads,
        norm_out_g=ones((1, emb_dim)), norm_out_b=zeros((1, emb_dim)),
        fc_out_w=w((emb_dim, n_outs)), fc_out_b=zeros((1, n_outs)),
    )


# ---------------------------------- main ---------------------------------------

if __name__ == "__main__":
    emb_dim = 32          # protein embedding dim
    kvdim = 24            # ligand embedding dim
    n_layers = 2
    input_attn_heads = 4
    self_attn_heads = 4
    ff_scale = 2
    n_outs = 1
    B, S_prot, S_lig = 2, 8, 8

    root = jax.random.PRNGKey(0)
    k_params, k_prot, k_lig = jax.random.split(root, 3)

    params = init_params(k_params, emb_dim, kvdim, n_layers,
                         input_attn_heads, self_attn_heads, ff_scale, n_outs)

    protein_emb = jax.random.normal(k_prot, (B, S_prot, emb_dim), jnp.float32)
    ligand_emb = jax.random.normal(k_lig, (B, S_lig, kvdim), jnp.float32)

    out = binding_x_forward(params, protein_emb, ligand_emb)
    out = jax.block_until_ready(out)

    assert out.shape == (B, n_outs), out.shape
    assert bool(jnp.all(jnp.isfinite(out)))
    print("KERNEL_OK")
</pallas_src>

<mosaic_0001>
module attributes {stable_mosaic.version = 11 : i64} {
  func.func @_cross_layer_kernel(%arg0: i32, %arg1: memref<1x8x32xf32, #tpu.memory_space<vmem>>, %arg2: memref<1x8x24xf32, #tpu.memory_space<vmem>>, %arg3: memref<1x32xf32, #tpu.memory_space<vmem>>, %arg4: memref<1x32xf32, #tpu.memory_space<vmem>>, %arg5: memref<1x24xf32, #tpu.memory_space<vmem>>, %arg6: memref<1x24xf32, #tpu.memory_space<vmem>>, %arg7: memref<32x32xf32, #tpu.memory_space<vmem>>, %arg8: memref<1x32xf32, #tpu.memory_space<vmem>>, %arg9: memref<24x64xf32, #tpu.memory_space<vmem>>, %arg10: memref<1x64xf32, #tpu.memory_space<vmem>>, %arg11: memref<32x32xf32, #tpu.memory_space<vmem>>, %arg12: memref<1x32xf32, #tpu.memory_space<vmem>>, %arg13: memref<1x32xf32, #tpu.memory_space<vmem>>, %arg14: memref<1x32xf32, #tpu.memory_space<vmem>>, %arg15: memref<32x64xf32, #tpu.memory_space<vmem>>, %arg16: memref<1x64xf32, #tpu.memory_space<vmem>>, %arg17: memref<64x32xf32, #tpu.memory_space<vmem>>, %arg18: memref<1x32xf32, #tpu.memory_space<vmem>>, %arg19: memref<1x8x32xf32, #tpu.memory_space<vmem>>) attributes {dimension_semantics = [#tpu.dimension_semantics<parallel>], iteration_bounds = array<i64: 2>, scalar_prefetch = 0 : i64, scratch_operands = 0 : i64, tpu.core_type = #tpu.core_type<tc>, window_params = [{transform_indices = @transform_0, window_bounds = array<i64: 1, 8, 32>}, {transform_indices = @transform_1, window_bounds = array<i64: 1, 8, 24>}, {pipeline_mode = #tpu.pipeline_mode<synchronous>, transform_indices = @transform_2, window_bounds = array<i64: 1, 32>}, {pipeline_mode = #tpu.pipeline_mode<synchronous>, transform_indices = @transform_3, window_bounds = array<i64: 1, 32>}, {pipeline_mode = #tpu.pipeline_mode<synchronous>, transform_indices = @transform_4, window_bounds = array<i64: 1, 24>}, {pipeline_mode = #tpu.pipeline_mode<synchronous>, transform_indices = @transform_5, window_bounds = array<i64: 1, 24>}, {pipeline_mode = #tpu.pipeline_mode<synchronous>, transform_indices = @transform_6, window_bounds = array<i64: 32, 32>}, {pipeline_mode = #tpu.pipeline_mode<synchronous>, transform_indices = @transform_7, window_bounds = array<i64: 1, 32>}, {pipeline_mode = #tpu.pipeline_mode<synchronous>, transform_indices = @transform_8, window_bounds = array<i64: 24, 64>}, {pipeline_mode = #tpu.pipeline_mode<synchronous>, transform_indices = @transform_9, window_bounds = array<i64: 1, 64>}, {pipeline_mode = #tpu.pipeline_mode<synchronous>, transform_indices = @transform_10, window_bounds = array<i64: 32, 32>}, {pipeline_mode = #tpu.pipeline_mode<synchronous>, transform_indices = @transform_11, window_bounds = array<i64: 1, 32>}, {pipeline_mode = #tpu.pipeline_mode<synchronous>, transform_indices = @transform_12, window_bounds = array<i64: 1, 32>}, {pipeline_mode = #tpu.pipeline_mode<synchronous>, transform_indices = @transform_13, window_bounds = array<i64: 1, 32>}, {pipeline_mode = #tpu.pipeline_mode<synchronous>, transform_indices = @transform_14, window_bounds = array<i64: 32, 64>}, {pipeline_mode = #tpu.pipeline_mode<synchronous>, transform_indices = @transform_15, window_bounds = array<i64: 1, 64>}, {pipeline_mode = #tpu.pipeline_mode<synchronous>, transform_indices = @transform_16, window_bounds = array<i64: 64, 32>}, {pipeline_mode = #tpu.pipeline_mode<synchronous>, transform_indices = @transform_17, window_bounds = array<i64: 1, 32>}, {transform_indices = @transform_18, window_bounds = array<i64: 1, 8, 32>}]} {
    %c0 = arith.constant 0 : index
    %c0_0 = arith.constant 0 : index
    %c0_1 = arith.constant 0 : index
    %0 = vector.load %arg1[%c0, %c0_0, %c0_1] : memref<1x8x32xf32, #tpu.memory_space<vmem>>, vector<1x8x32xf32>
    %1 = vector.shape_cast %0 : vector<1x8x32xf32> to vector<8x32xf32>
    %c0_2 = arith.constant 0 : index
    %c0_3 = arith.constant 0 : index
    %2 = vector.load %arg3[%c0_2, %c0_3] : memref<1x32xf32, #tpu.memory_space<vmem>>, vector<1x32xf32>
    %c0_4 = arith.constant 0 : index
    %c0_5 = arith.constant 0 : index
    %3 = vector.load %arg4[%c0_4, %c0_5] : memref<1x32xf32, #tpu.memory_space<vmem>>, vector<1x32xf32>
    %cst = arith.constant dense<0.000000e+00> : vector<8xf32>
    %4 = vector.multi_reduction <add>, %1, %cst [1] : vector<8x32xf32> to vector<8xf32>
    %5 = vector.shape_cast %4 : vector<8xf32> to vector<8x1xf32>
    %cst_6 = arith.constant 3.200000e+01 : f32
    %6 = vector.broadcast %cst_6 : f32 to vector<8x1xf32>
    %7 = arith.divf %5, %6 : vector<8x1xf32>
    %8 = vector.broadcast %7 : vector<8x1xf32> to vector<8x32xf32>
    %9 = arith.subf %1, %8 : vector<8x32xf32>
    %10 = arith.mulf %9, %9 : vector<8x32xf32>
    %cst_7 = arith.constant dense<0.000000e+00> : vector<8xf32>
    %11 = vector.multi_reduction <add>, %10, %cst_7 [1] : vector<8x32xf32> to vector<8xf32>
    %12 = vector.shape_cast %11 : vector<8xf32> to vector<8x1xf32>
    %cst_8 = arith.constant 3.200000e+01 : f32
    %13 = vector.broadcast %cst_8 : f32 to vector<8x1xf32>
    %14 = arith.divf %12, %13 : vector<8x1xf32>
    %cst_9 = arith.constant 9.99999974E-6 : f32
    %15 = vector.broadcast %cst_9 : f32 to vector<8x1xf32>
    %16 = arith.addf %14, %15 : vector<8x1xf32>
    %17 = math.rsqrt %16 : vector<8x1xf32>
    %18 = vector.broadcast %17 : vector<8x1xf32> to vector<8x32xf32>
    %19 = arith.mulf %9, %18 : vector<8x32xf32>
    %20 = vector.broadcast %2 : vector<1x32xf32> to vector<8x32xf32>
    %21 = arith.mulf %19, %20 : vector<8x32xf32>
    %22 = vector.broadcast %3 : vector<1x32xf32> to vector<8x32xf32>
    %23 = arith.addf %21, %22 : vector<8x32xf32>
    %c0_10 = arith.constant 0 : index
    %c0_11 = arith.constant 0 : index
    %c0_12 = arith.constant 0 : index
    %24 = vector.load %arg2[%c0_10, %c0_11, %c0_12] : memref<1x8x24xf32, #tpu.memory_space<vmem>>, vector<1x8x24xf32>
    %25 = vector.shape_cast %24 : vector<1x8x24xf32> to vector<8x24xf32>
    %c0_13 = arith.constant 0 : index
    %c0_14 = arith.constant 0 : index
    %26 = vector.load %arg5[%c0_13, %c0_14] : memref<1x24xf32, #tpu.memory_space<vmem>>, vector<1x24xf32>
    %c0_15 = arith.constant 0 : index
    %c0_16 = arith.constant 0 : index
    %27 = vector.load %arg6[%c0_15, %c0_16] : memref<1x24xf32, #tpu.memory_space<vmem>>, vector<1x24xf32>
    %cst_17 = arith.constant dense<0.000000e+00> : vector<8xf32>
    %28 = vector.multi_reduction <add>, %25, %cst_17 [1] : vector<8x24xf32> to vector<8xf32>
    %29 = vector.shape_cast %28 : vector<8xf32> to vector<8x1xf32>
    %cst_18 = arith.constant 2.400000e+01 : f32
    %30 = vector.broadcast %cst_18 : f32 to vector<8x1xf32>
    %31 = arith.divf %29, %30 : vector<8x1xf32>
    %32 = vector.broadcast %31 : vector<8x1xf32> to vector<8x24xf32>
    %33 = arith.subf %25, %32 : vector<8x24xf32>
    %34 = arith.mulf %33, %33 : vector<8x24xf32>
    %cst_19 = arith.constant dense<0.000000e+00> : vector<8xf32>
    %35 = vector.multi_reduction <add>, %34, %cst_19 [1] : vector<8x24xf32> to vector<8xf32>
    %36 = vector.shape_cast %35 : vector<8xf32> to vector<8x1xf32>
    %cst_20 = arith.constant 2.400000e+01 : f32
    %37 = vector.broadcast %cst_20 : f32 to vector<8x1xf32>
    %38 = arith.divf %36, %37 : vector<8x1xf32>
    %cst_21 = arith.constant 9.99999974E-6 : f32
    %39 = vector.broadcast %cst_21 : f32 to vector<8x1xf32>
    %40 = arith.addf %38, %39 : vector<8x1xf32>
    %41 = math.rsqrt %40 : vector<8x1xf32>
    %42 = vector.broadcast %41 : vector<8x1xf32> to vector<8x24xf32>
    %43 = arith.mulf %33, %42 : vector<8x24xf32>
    %44 = vector.broadcast %26 : vector<1x24xf32> to vector<8x24xf32>
    %45 = arith.mulf %43, %44 : vector<8x24xf32>
    %46 = vector.broadcast %27 : vector<1x24xf32> to vector<8x24xf32>
    %47 = arith.addf %45, %46 : vector<8x24xf32>
    %c0_22 = arith.constant 0 : index
    %c0_23 = arith.constant 0 : index
    %48 = vector.load %arg7[%c0_22, %c0_23] : memref<32x32xf32, #tpu.memory_space<vmem>>, vector<32x32xf32>
    %cst_24 = arith.constant dense<0.000000e+00> : vector<8x32xf32>
    %49 = tpu.matmul %23, %48, %cst_24 {dimension_numbers = #tpu.dot_dimension_numbers<[1], [0], [0], [1], [0, 0, 1, 1], [], []>} : vector<8x32xf32>, vector<32x32xf32>, vector<8x32xf32> -> vector<8x32xf32>
    %c0_25 = arith.constant 0 : index
    %c0_26 = arith.constant 0 : index
    %50 = vector.load %arg8[%c0_25, %c0_26] : memref<1x32xf32, #tpu.memory_space<vmem>>, vector<1x32xf32>
    %51 = vector.broadcast %50 : vector<1x32xf32> to vector<8x32xf32>
    %52 = arith.addf %49, %51 : vector<8x32xf32>
    %c0_27 = arith.constant 0 : index
    %c0_28 = arith.constant 0 : index
    %53 = vector.load %arg9[%c0_27, %c0_28] : memref<24x64xf32, #tpu.memory_space<vmem>>, vector<24x64xf32>
    %cst_29 = arith.constant dense<0.000000e+00> : vector<8x64xf32>
    %54 = tpu.matmul %47, %53, %cst_29 {dimension_numbers = #tpu.dot_dimension_numbers<[1], [0], [0], [1], [0, 0, 1, 1], [], []>} : vector<8x24xf32>, vector<24x64xf32>, vector<8x64xf32> -> vector<8x64xf32>
    %c0_30 = arith.constant 0 : index
    %c0_31 = arith.constant 0 : index
    %55 = vector.load %arg10[%c0_30, %c0_31] : memref<1x64xf32, #tpu.memory_space<vmem>>, vector<1x64xf32>
    %56 = vector.broadcast %55 : vector<1x64xf32> to vector<8x64xf32>
    %57 = arith.addf %54, %56 : vector<8x64xf32>
    %58 = vector.extract_strided_slice %57 {offsets = [0, 0], sizes = [8, 32], strides = [1, 1]} : vector<8x64xf32> to vector<8x32xf32>
    %59 = vector.extract_strided_slice %57 {offsets = [0, 32], sizes = [8, 32], strides = [1, 1]} : vector<8x64xf32> to vector<8x32xf32>
    %60 = vector.extract_strided_slice %52 {offsets = [0, 0], sizes = [8, 8], strides = [1, 1]} : vector<8x32xf32> to vector<8x8xf32>
    %cst_32 = arith.constant 0.353553385 : f32
    %61 = vector.broadcast %cst_32 : f32 to vector<8x8xf32>
    %62 = arith.mulf %60, %61 : vector<8x8xf32>
    %63 = vector.extract_strided_slice %58 {offsets = [0, 0], sizes = [8, 8], strides = [1, 1]} : vector<8x32xf32> to vector<8x8xf32>
    %64 = vector.extract_strided_slice %59 {offsets = [0, 0], sizes = [8, 8], strides = [1, 1]} : vector<8x32xf32> to vector<8x8xf32>
    %cst_33 = arith.constant dense<0.000000e+00> : vector<8x8xf32>
    %65 = tpu.matmul %62, %63, %cst_33 {dimension_numbers = #tpu.dot_dimension_numbers<[1], [1], [0], [0], [0, 0, 1, 0], [], []>} : vector<8x8xf32>, vector<8x8xf32>, vector<8x8xf32> -> vector<8x8xf32>
    %cst_34 = arith.constant dense<0xFF800000> : vector<8xf32>
    %66 = vector.multi_reduction <maximumf>, %65, %cst_34 [1] : vector<8x8xf32> to vector<8xf32>
    %67 = vector.shape_cast %66 : vector<8xf32> to vector<8x1xf32>
    %68 = vector.broadcast %67 : vector<8x1xf32> to vector<8x8xf32>
    %69 = arith.subf %65, %68 : vector<8x8xf32>
    %70 = math.exp %69 : vector<8x8xf32>
    %cst_35 = arith.constant dense<0.000000e+00> : vector<8xf32>
    %71 = vector.multi_reduction <add>, %70, %cst_35 [1] : vector<8x8xf32> to vector<8xf32>
    %72 = vector.shape_cast %71 : vector<8xf32> to vector<8x1xf32>
    %73 = tpu.reciprocal %72 {approx = true} : vector<8x1xf32> -> vector<8x1xf32>
    %74 = vector.broadcast %73 : vector<8x1xf32> to vector<8x8xf32>
    %75 = arith.mulf %70, %74 : vector<8x8xf32>
    %cst_36 = arith.constant dense<0.000000e+00> : vector<8x8xf32>
    %76 = tpu.matmul %75, %64, %cst_36 {dimension_numbers = #tpu.dot_dimension_numbers<[1], [0], [0], [1], [0, 0, 1, 1], [], []>} : vector<8x8xf32>, vector<8x8xf32>, vector<8x8xf32> -> vector<8x8xf32>
    %77 = vector.extract_strided_slice %52 {offsets = [0, 8], sizes = [8, 8], strides = [1, 1]} : vector<8x32xf32> to vector<8x8xf32>
    %cst_37 = arith.constant 0.353553385 : f32
    %78 = vector.broadcast %cst_37 : f32 to vector<8x8xf32>
    %79 = arith.mulf %77, %78 : vector<8x8xf32>
    %80 = vector.extract_strided_slice %58 {offsets = [0, 8], sizes = [8, 8], strides = [1, 1]} : vector<8x32xf32> to vector<8x8xf32>
    %81 = vector.extract_strided_slice %59 {offsets = [0, 8], sizes = [8, 8], strides = [1, 1]} : vector<8x32xf32> to vector<8x8xf32>
    %cst_38 = arith.constant dense<0.000000e+00> : vector<8x8xf32>
    %82 = tpu.matmul %79, %80, %cst_38 {dimension_numbers = #tpu.dot_dimension_numbers<[1], [1], [0], [0], [0, 0, 1, 0], [], []>} : vector<8x8xf32>, vector<8x8xf32>, vector<8x8xf32> -> vector<8x8xf32>
    %cst_39 = arith.constant dense<0xFF800000> : vector<8xf32>
    %83 = vector.multi_reduction <maximumf>, %82, %cst_39 [1] : vector<8x8xf32> to vector<8xf32>
    %84 = vector.shape_cast %83 : vector<8xf32> to vector<8x1xf32>
    %85 = vector.broadcast %84 : vector<8x1xf32> to vector<8x8xf32>
    %86 = arith.subf %82, %85 : vector<8x8xf32>
    %87 = math.exp %86 : vector<8x8xf32>
    %cst_40 = arith.constant dense<0.000000e+00> : vector<8xf32>
    %88 = vector.multi_reduction <add>, %87, %cst_40 [1] : vector<8x8xf32> to vector<8xf32>
    %89 = vector.shape_cast %88 : vector<8xf32> to vector<8x1xf32>
    %90 = tpu.reciprocal %89 {approx = true} : vector<8x1xf32> -> vector<8x1xf32>
    %91 = vector.broadcast %90 : vector<8x1xf32> to vector<8x8xf32>
    %92 = arith.mulf %87, %91 : vector<8x8xf32>
    %cst_41 = arith.constant dense<0.000000e+00> : vector<8x8xf32>
    %93 = tpu.matmul %92, %81, %cst_41 {dimension_numbers = #tpu.dot_dimension_numbers<[1], [0], [0], [1], [0, 0, 1, 1], [], []>} : vector<8x8xf32>, vector<8x8xf32>, vector<8x8xf32> -> vector<8x8xf32>
    %94 = vector.extract_strided_slice %52 {offsets = [0, 16], sizes = [8, 8], strides = [1, 1]} : vector<8x32xf32> to vector<8x8xf32>
    %cst_42 = arith.constant 0.353553385 : f32
    %95 = vector.broadcast %cst_42 : f32 to vector<8x8xf32>
    %96 = arith.mulf %94, %95 : vector<8x8xf32>
    %97 = vector.extract_strided_slice %58 {offsets = [0, 16], sizes = [8, 8], strides = [1, 1]} : vector<8x32xf32> to vector<8x8xf32>
    %98 = vector.extract_strided_slice %59 {offsets = [0, 16], sizes = [8, 8], strides = [1, 1]} : vector<8x32xf32> to vector<8x8xf32>
    %cst_43 = arith.constant dense<0.000000e+00> : vector<8x8xf32>
    %99 = tpu.matmul %96, %97, %cst_43 {dimension_numbers = #tpu.dot_dimension_numbers<[1], [1], [0], [0], [0, 0, 1, 0], [], []>} : vector<8x8xf32>, vector<8x8xf32>, vector<8x8xf32> -> vector<8x8xf32>
    %cst_44 = arith.constant dense<0xFF800000> : vector<8xf32>
    %100 = vector.multi_reduction <maximumf>, %99, %cst_44 [1] : vector<8x8xf32> to vector<8xf32>
    %101 = vector.shape_cast %100 : vector<8xf32> to vector<8x1xf32>
    %102 = vector.broadcast %101 : vector<8x1xf32> to vector<8x8xf32>
    %103 = arith.subf %99, %102 : vector<8x8xf32>
    %104 = math.exp %103 : vector<8x8xf32>
    %cst_45 = arith.constant dense<0.000000e+00> : vector<8xf32>
    %105 = vector.multi_reduction <add>, %104, %cst_45 [1] : vector<8x8xf32> to vector<8xf32>
    %106 = vector.shape_cast %105 : vector<8xf32> to vector<8x1xf32>
    %107 = tpu.reciprocal %106 {approx = true} : vector<8x1xf32> -> vector<8x1xf32>
    %108 = vector.broadcast %107 : vector<8x1xf32> to vector<8x8xf32>
    %109 = arith.mulf %104, %108 : vector<8x8xf32>
    %cst_46 = arith.constant dense<0.000000e+00> : vector<8x8xf32>
    %110 = tpu.matmul %109, %98, %cst_46 {dimension_numbers = #tpu.dot_dimension_numbers<[1], [0], [0], [1], [0, 0, 1, 1], [], []>} : vector<8x8xf32>, vector<8x8xf32>, vector<8x8xf32> -> vector<8x8xf32>
    %111 = vector.extract_strided_slice %52 {offsets = [0, 24], sizes = [8, 8], strides = [1, 1]} : vector<8x32xf32> to vector<8x8xf32>
    %cst_47 = arith.constant 0.353553385 : f32
    %112 = vector.broadcast %cst_47 : f32 to vector<8x8xf32>
    %113 = arith.mulf %111, %112 : vector<8x8xf32>
    %114 = vector.extract_strided_slice %58 {offsets = [0, 24], sizes = [8, 8], strides = [1, 1]} : vector<8x32xf32> to vector<8x8xf32>
    %115 = vector.extract_strided_slice %59 {offsets = [0, 24], sizes = [8, 8], strides = [1, 1]} : vector<8x32xf32> to vector<8x8xf32>
    %cst_48 = arith.constant dense<0.000000e+00> : vector<8x8xf32>
    %116 = tpu.matmul %113, %114, %cst_48 {dimension_numbers = #tpu.dot_dimension_numbers<[1], [1], [0], [0], [0, 0, 1, 0], [], []>} : vector<8x8xf32>, vector<8x8xf32>, vector<8x8xf32> -> vector<8x8xf32>
    %cst_49 = arith.constant dense<0xFF800000> : vector<8xf32>
    %117 = vector.multi_reduction <maximumf>, %116, %cst_49 [1] : vector<8x8xf32> to vector<8xf32>
    %118 = vector.shape_cast %117 : vector<8xf32> to vector<8x1xf32>
    %119 = vector.broadcast %118 : vector<8x1xf32> to vector<8x8xf32>
    %120 = arith.subf %116, %119 : vector<8x8xf32>
    %121 = math.exp %120 : vector<8x8xf32>
    %cst_50 = arith.constant dense<0.000000e+00> : vector<8xf32>
    %122 = vector.multi_reduction <add>, %121, %cst_50 [1] : vector<8x8xf32> to vector<8xf32>
    %123 = vector.shape_cast %122 : vector<8xf32> to vector<8x1xf32>
    %124 = tpu.reciprocal %123 {approx = true} : vector<8x1xf32> -> vector<8x1xf32>
    %125 = vector.broadcast %124 : vector<8x1xf32> to vector<8x8xf32>
    %126 = arith.mulf %121, %125 : vector<8x8xf32>
    %cst_51 = arith.constant dense<0.000000e+00> : vector<8x8xf32>
    %127 = tpu.matmul %126, %115, %cst_51 {dimension_numbers = #tpu.dot_dimension_numbers<[1], [0], [0], [1], [0, 0, 1, 1], [], []>} : vector<8x8xf32>, vector<8x8xf32>, vector<8x8xf32> -> vector<8x8xf32>
    %128 = tpu.concatenate %76, %93, %110, %127 in 1 : vector<8x8xf32>, vector<8x8xf32>, vector<8x8xf32>, vector<8x8xf32> -> vector<8x32xf32>
    %c0_52 = arith.constant 0 : index
    %c0_53 = arith.constant 0 : index
    %129 = vector.load %arg11[%c0_52, %c0_53] : memref<32x32xf32, #tpu.memory_space<vmem>>, vector<32x32xf32>
    %cst_54 = arith.constant dense<0.000000e+00> : vector<8x32xf32>
    %130 = tpu.matmul %128, %129, %cst_54 {dimension_numbers = #tpu.dot_dimension_numbers<[1], [0], [0], [1], [0, 0, 1, 1], [], []>} : vector<8x32xf32>, vector<32x32xf32>, vector<8x32xf32> -> vector<8x32xf32>
    %c0_55 = arith.constant 0 : index
    %c0_56 = arith.constant 0 : index
    %131 = vector.load %arg12[%c0_55, %c0_56] : memref<1x32xf32, #tpu.memory_space<vmem>>, vector<1x32xf32>
    %132 = vector.broadcast %131 : vector<1x32xf32> to vector<8x32xf32>
    %133 = arith.addf %130, %132 : vector<8x32xf32>
    %134 = arith.addf %133, %23 : vector<8x32xf32>
    %c0_57 = arith.constant 0 : index
    %c0_58 = arith.constant 0 : index
    %135 = vector.load %arg13[%c0_57, %c0_58] : memref<1x32xf32, #tpu.memory_space<vmem>>, vector<1x32xf32>
    %c0_59 = arith.constant 0 : index
    %c0_60 = arith.constant 0 : index
    %136 = vector.load %arg14[%c0_59, %c0_60] : memref<1x32xf32, #tpu.memory_space<vmem>>, vector<1x32xf32>
    %cst_61 = arith.constant dense<0.000000e+00> : vector<8xf32>
    %137 = vector.multi_reduction <add>, %134, %cst_61 [1] : vector<8x32xf32> to vector<8xf32>
    %138 = vector.shape_cast %137 : vector<8xf32> to vector<8x1xf32>
    %cst_62 = arith.constant 3.200000e+01 : f32
    %139 = vector.broadcast %cst_62 : f32 to vector<8x1xf32>
    %140 = arith.divf %138, %139 : vector<8x1xf32>
    %141 = vector.broadcast %140 : vector<8x1xf32> to vector<8x32xf32>
    %142 = arith.subf %134, %141 : vector<8x32xf32>
    %143 = arith.mulf %142, %142 : vector<8x32xf32>
    %cst_63 = arith.constant dense<0.000000e+00> : vector<8xf32>
    %144 = vector.multi_reduction <add>, %143, %cst_63 [1] : vector<8x32xf32> to vector<8xf32>
    %145 = vector.shape_cast %144 : vector<8xf32> to vector<8x1xf32>
    %cst_64 = arith.constant 3.200000e+01 : f32
    %146 = vector.broadcast %cst_64 : f32 to vector<8x1xf32>
    %147 = arith.divf %145, %146 : vector<8x1xf32>
    %cst_65 = arith.constant 9.99999974E-6 : f32
    %148 = vector.broadcast %cst_65 : f32 to vector<8x1xf32>
    %149 = arith.addf %147, %148 : vector<8x1xf32>
    %150 = math.rsqrt %149 : vector<8x1xf32>
    %151 = vector.broadcast %150 : vector<8x1xf32> to vector<8x32xf32>
    %152 = arith.mulf %142, %151 : vector<8x32xf32>
    %153 = vector.broadcast %135 : vector<1x32xf32> to vector<8x32xf32>
    %154 = arith.mulf %152, %153 : vector<8x32xf32>
    %155 = vector.broadcast %136 : vector<1x32xf32> to vector<8x32xf32>
    %156 = arith.addf %154, %155 : vector<8x32xf32>
    %c0_66 = arith.constant 0 : index
    %c0_67 = arith.constant 0 : index
    %157 = vector.load %arg15[%c0_66, %c0_67] : memref<32x64xf32, #tpu.memory_space<vmem>>, vector<32x64xf32>
    %cst_68 = arith.constant dense<0.000000e+00> : vector<8x64xf32>
    %158 = tpu.matmul %156, %157, %cst_68 {dimension_numbers = #tpu.dot_dimension_numbers<[1], [0], [0], [1], [0, 0, 1, 1], [], []>} : vector<8x32xf32>, vector<32x64xf32>, vector<8x64xf32> -> vector<8x64xf32>
    %c0_69 = arith.constant 0 : index
    %c0_70 = arith.constant 0 : index
    %159 = vector.load %arg16[%c0_69, %c0_70] : memref<1x64xf32, #tpu.memory_space<vmem>>, vector<1x64xf32>
    %160 = vector.broadcast %159 : vector<1x64xf32> to vector<8x64xf32>
    %161 = arith.addf %158, %160 : vector<8x64xf32>
    %cst_71 = arith.constant 5.000000e-01 : f32
    %162 = vector.broadcast %cst_71 : f32 to vector<8x64xf32>
    %163 = arith.mulf %162, %161 : vector<8x64xf32>
    %cst_72 = arith.constant 0.707106769 : f32
    %164 = vector.broadcast %cst_72 : f32 to vector<8x64xf32>
    %165 = arith.mulf %161, %164 : vector<8x64xf32>
    %166 = math.erf %165 : vector<8x64xf32>
    %cst_73 = arith.constant 1.000000e+00 : f32
    %167 = vector.broadcast %cst_73 : f32 to vector<8x64xf32>
    %168 = arith.addf %167, %166 : vector<8x64xf32>
    %169 = arith.mulf %163, %168 : vector<8x64xf32>
    %c0_74 = arith.constant 0 : index
    %c0_75 = arith.constant 0 : index
    %170 = vector.load %arg17[%c0_74, %c0_75] : memref<64x32xf32, #tpu.memory_space<vmem>>, vector<64x32xf32>
    %cst_76 = arith.constant dense<0.000000e+00> : vector<8x32xf32>
    %171 = tpu.matmul %169, %170, %cst_76 {dimension_numbers = #tpu.dot_dimension_numbers<[1], [0], [0], [1], [0, 0, 1, 1], [], []>} : vector<8x64xf32>, vector<64x32xf32>, vector<8x32xf32> -> vector<8x32xf32>
    %c0_77 = arith.constant 0 : index
    %c0_78 = arith.constant 0 : index
    %172 = vector.load %arg18[%c0_77, %c0_78] : memref<1x32xf32, #tpu.memory_space<vmem>>, vector<1x32xf32>
    %173 = vector.broadcast %172 : vector<1x32xf32> to vector<8x32xf32>
    %174 = arith.addf %171, %173 : vector<8x32xf32>
    %c0_79 = arith.constant 0 : index
    %c0_80 = arith.constant 0 : index
    %c0_81 = arith.constant 0 : index
    %175 = vector.load %arg19[%c0_79, %c0_80, %c0_81] : memref<1x8x32xf32, #tpu.memory_space<vmem>>, vector<1x8x32xf32>
    %176 = vector.shape_cast %175 : vector<1x8x32xf32> to vector<8x32xf32>
    %177 = vector.shape_cast %174 : vector<8x32xf32> to vector<1x8x32xf32>
    tpu.vector_store %arg19[%c0_79, %c0_80, %c0_81], %177 {strides = array<i32>} : memref<1x8x32xf32, #tpu.memory_space<vmem>>, vector<1x8x32xf32>,
    return
  }
  func.func @transform_0(%arg0: i32) -> (i32, i32, i32) {
    %c0_i32 = arith.constant 0 : i32
    %c0_i32_0 = arith.constant 0 : i32
    %c0_i32_1 = arith.constant 0 : i32
    return %arg0, %c0_i32, %c0_i32_0 : i32, i32, i32
  }
  func.func @transform_1(%arg0: i32) -> (i32, i32, i32) {
    %c0_i32 = arith.constant 0 : i32
    %c0_i32_0 = arith.constant 0 : i32
    %c0_i32_1 = arith.constant 0 : i32
    return %arg0, %c0_i32, %c0_i32_0 : i32, i32, i32
  }
  func.func @transform_2(%arg0: i32) -> (i32, i32) {
    %c0_i32 = arith.constant 0 : i32
    %c0_i32_0 = arith.constant 0 : i32
    %c0_i32_1 = arith.constant 0 : i32
    return %c0_i32, %c0_i32_0 : i32, i32
  }
  func.func @transform_3(%arg0: i32) -> (i32, i32) {
    %c0_i32 = arith.constant 0 : i32
    %c0_i32_0 = arith.constant 0 : i32
    %c0_i32_1 = arith.constant 0 : i32
    return %c0_i32, %c0_i32_0 : i32, i32
  }
  func.func @transform_4(%arg0: i32) -> (i32, i32) {
    %c0_i32 = arith.constant 0 : i32
    %c0_i32_0 = arith.constant 0 : i32
    %c0_i32_1 = arith.constant 0 : i32
    return %c0_i32, %c0_i32_0 : i32, i32
  }
  func.func @transform_5(%arg0: i32) -> (i32, i32) {
    %c0_i32 = arith.constant 0 : i32
    %c0_i32_0 = arith.constant 0 : i32
    %c0_i32_1 = arith.constant 0 : i32
    return %c0_i32, %c0_i32_0 : i32, i32
  }
  func.func @transform_6(%arg0: i32) -> (i32, i32) {
    %c0_i32 = arith.constant 0 : i32
    %c0_i32_0 = arith.constant 0 : i32
    %c0_i32_1 = arith.constant 0 : i32
    return %c0_i32, %c0_i32_0 : i32, i32
  }
  func.func @transform_7(%arg0: i32) -> (i32, i32) {
    %c0_i32 = arith.constant 0 : i32
    %c0_i32_0 = arith.constant 0 : i32
    %c0_i32_1 = arith.constant 0 : i32
    return %c0_i32, %c0_i32_0 : i32, i32
  }
  func.func @transform_8(%arg0: i32) -> (i32, i32) {
    %c0_i32 = arith.constant 0 : i32
    %c0_i32_0 = arith.constant 0 : i32
    %c0_i32_1 = arith.constant 0 : i32
    return %c0_i32, %c0_i32_0 : i32, i32
  }
  func.func @transform_9(%arg0: i32) -> (i32, i32) {
    %c0_i32 = arith.constant 0 : i32
    %c0_i32_0 = arith.constant 0 : i32
    %c0_i32_1 = arith.constant 0 : i32
    return %c0_i32, %c0_i32_0 : i32, i32
  }
  func.func @transform_10(%arg0: i32) -> (i32, i32) {
    %c0_i32 = arith.constant 0 : i32
    %c0_i32_0 = arith.constant 0 : i32
    %c0_i32_1 = arith.constant 0 : i32
    return %c0_i32, %c0_i32_0 : i32, i32
  }
  func.func @transform_11(%arg0: i32) -> (i32, i32) {
    %c0_i32 = arith.constant 0 : i32
    %c0_i32_0 = arith.constant 0 : i32
    %c0_i32_1 = arith.constant 0 : i32
    return %c0_i32, %c0_i32_0 : i32, i32
  }
  func.func @transform_12(%arg0: i32) -> (i32, i32) {
    %c0_i32 = arith.constant 0 : i32
    %c0_i32_0 = arith.constant 0 : i32
    %c0_i32_1 = arith.constant 0 : i32
    return %c0_i32, %c0_i32_0 : i32, i32
  }
  func.func @transform_13(%arg0: i32) -> (i32, i32) {
    %c0_i32 = arith.constant 0 : i32
    %c0_i32_0 = arith.constant 0 : i32
    %c0_i32_1 = arith.constant 0 : i32
    return %c0_i32, %c0_i32_0 : i32, i32
  }
  func.func @transform_14(%arg0: i32) -> (i32, i32) {
    %c0_i32 = arith.constant 0 : i32
    %c0_i32_0 = arith.constant 0 : i32
    %c0_i32_1 = arith.constant 0 : i32
    return %c0_i32, %c0_i32_0 : i32, i32
  }
  func.func @transform_15(%arg0: i32) -> (i32, i32) {
    %c0_i32 = arith.constant 0 : i32
    %c0_i32_0 = arith.constant 0 : i32
    %c0_i32_1 = arith.constant 0 : i32
    return %c0_i32, %c0_i32_0 : i32, i32
  }
  func.func @transform_16(%arg0: i32) -> (i32, i32) {
    %c0_i32 = arith.constant 0 : i32
    %c0_i32_0 = arith.constant 0 : i32
    %c0_i32_1 = arith.constant 0 : i32
    return %c0_i32, %c0_i32_0 : i32, i32
  }
  func.func @transform_17(%arg0: i32) -> (i32, i32) {
    %c0_i32 = arith.constant 0 : i32
    %c0_i32_0 = arith.constant 0 : i32
    %c0_i32_1 = arith.constant 0 : i32
    return %c0_i32, %c0_i32_0 : i32, i32
  }
  func.func @transform_18(%arg0: i32) -> (i32, i32, i32) {
    %c0_i32 = arith.constant 0 : i32
    %c0_i32_0 = arith.constant 0 : i32
    %c0_i32_1 = arith.constant 0 : i32
    return %arg0, %c0_i32, %c0_i32_0 : i32, i32, i32
  }
}

</mosaic_0001>

<llo_original>
// kernel: tpu_custom_call.1
$region0: #{tpu_custom_call.1}
  #allocation0 [shape = 'u32[]', space=smem, size = 0x4, offset = 0x4, fixed_abs, tag = 'smem constant byte address 0x4 - core index']
  #allocation1 [shape = 'u32[144,128]{1,0:T(1,128)}', space=vmem, size = 0x12000, scoped, tag = 'internal scratch']
  %s0 = inlined_call_operand.hbm [shape: f32[2,8,32], index: 0, kind: input, shape index: {}]
  %s1 = inlined_call_operand.hbm [shape: f32[2,8,24], index: 1, kind: input, shape index: {}]
  %s2 = inlined_call_operand.vmem [shape: f32[1,32], index: 2, kind: input, shape index: {}]
  %s3 = inlined_call_operand.vmem [shape: f32[1,32], index: 3, kind: input, shape index: {}]
  %s4 = inlined_call_operand.hbm [shape: f32[1,24], index: 4, kind: input, shape index: {}]
  %s5 = inlined_call_operand.hbm [shape: f32[1,24], index: 5, kind: input, shape index: {}]
  %s6 = inlined_call_operand.vmem [shape: f32[32,32], index: 6, kind: input, shape index: {}]
  %s7 = inlined_call_operand.hbm [shape: f32[1,32], index: 7, kind: input, shape index: {}]
  %s8 = inlined_call_operand.vmem [shape: f32[24,64], index: 8, kind: input, shape index: {}]
  %s9 = inlined_call_operand.vmem [shape: f32[1,64], index: 9, kind: input, shape index: {}]
  %s10 = inlined_call_operand.vmem [shape: f32[32,32], index: 10, kind: input, shape index: {}]
  %s11 = inlined_call_operand.vmem [shape: f32[1,32], index: 11, kind: input, shape index: {}]
  %s12 = inlined_call_operand.hbm [shape: f32[1,32], index: 12, kind: input, shape index: {}]
  %s13 = inlined_call_operand.hbm [shape: f32[1,32], index: 13, kind: input, shape index: {}]
  %s14 = inlined_call_operand.vmem [shape: f32[32,64], index: 14, kind: input, shape index: {}]
  %s15 = inlined_call_operand.hbm [shape: f32[1,64], index: 15, kind: input, shape index: {}]
  %s16 = inlined_call_operand.vmem [shape: f32[64,32], index: 16, kind: input, shape index: {}]
  %s17 = inlined_call_operand.vmem [shape: f32[1,32], index: 17, kind: input, shape index: {}]
  %s18 = inlined_call_operand.hbm [shape: f32[2,8,32], index: 18, kind: output, shape index: {}]
  %s19 = sld [smem:[#allocation0]]
  $region137: #{tpu_custom_call.1} parent=0
    _
  %s21 = ssub.s32 1, %s19
  %s22 = scalar_select 0, %s21, %s19
  $region1: #{tpu_custom_call.1} parent=0
    #allocation2 [shape = 'u8[8192]{0}', space=vmem, size = 0x2000, scoped, tag = 'input window, operand 0']
    #allocation3 [shape = 's32[2]{0}', space=sflag, size = 0x8, scoped, tag = 'scoped memory for tpu_custom_call.1']
    #allocation4 [shape = 's32[2]{0}', space=sflag, size = 0x8, scoped, tag = 'scoped memory for tpu_custom_call.1']
    #allocation5 [shape = 'u8[8192]{0}', space=vmem, size = 0x2000, scoped, tag = 'input window, operand 1']
    #allocation6 [shape = 's32[2]{0}', space=sflag, size = 0x8, scoped, tag = 'scoped memory for tpu_custom_call.1']
    #allocation7 [shape = 'u8[512]{0}', space=vmem, size = 0x400, scoped, tag = 'input window, operand 4, single buffered']
    #allocation8 [shape = 'u8[512]{0}', space=vmem, size = 0x400, scoped, tag = 'input window, operand 5, single buffered']
    #allocation9 [shape = 's32[1]{0}', space=sflag, size = 0x4, scoped, tag = 'scoped memory for tpu_custom_call.1']
    #allocation10 [shape = 'u8[512]{0}', space=vmem, size = 0x400, scoped, tag = 'input window, operand 7, single buffered']
    #allocation11 [shape = 'u8[512]{0}', space=vmem, size = 0x400, scoped, tag = 'input window, operand 12, single buffered']
    #allocation12 [shape = 's32[1]{0}', space=sflag, size = 0x4, scoped, tag = 'scoped memory for tpu_custom_call.1']
    #allocation13 [shape = 'u8[512]{0}', space=vmem, size = 0x400, scoped, tag = 'input window, operand 13, single buffered']
    #allocation14 [shape = 'u8[512]{0}', space=vmem, size = 0x400, scoped, tag = 'input window, operand 15, single buffered']
    #allocation15 [shape = 's32[1]{0}', space=sflag, size = 0x4, scoped, tag = 'scoped memory for tpu_custom_call.1']
    #allocation16 [shape = 'u8[8192]{0}', space=vmem, size = 0x2000, scoped, tag = 'output window, operand 0']
    %23 = vsyncpa [#allocation3], 0
    %s24 = scalar_lea.sflag [#allocation3], 1
    %25 = vsyncpa %s24, 0
    %26 = vsyncpa [#allocation6], 0
    %s27 = scalar_lea.sflag [#allocation6], 1
    %28 = vsyncpa %s27, 0
    %29 = vsyncpa [#allocation9], 0
    %30 = vsyncpa [#allocation12], 0
    %31 = vsyncpa [#allocation15], 0
    %32 = vsyncpa [#allocation4], 0
    %s33 = scalar_lea.sflag [#allocation4], 1
    %34 = vsyncpa %s33, 0
    loop: start=0, step=1, limit=4
    $region2: #{tpu_custom_call.1} parent=1 // loop_pre_header
      _
    $region3: #{tpu_custom_call.1} parent=1 // loop_header
      %s36 = sphi 0, %s40
      %p37 = scmp.ge.s32.totalorder %s36, 4
      %s46 = sphi 0, %s48
      %s49 = sphi 0, %s46
      %s50 = sphi 0, %s49
      %s66 = sphi 0, %s50
      %s72 = sphi 0, %s74
      %s75 = sphi 0, %s72
      %s76 = sphi 0, %s75
      %s92 = sphi 0, %s76
      %s96 = sphi 0, %s96
      %s98 = sphi 0, %s96
      %s99 = sphi 0, %s98
      %s113 = sphi 0, %s99
      %s117 = sphi 0, %s117
      %s119 = sphi 0, %s117
      %s120 = sphi 0, %s119
      %s134 = sphi 0, %s120
      %s138 = sphi 0, %s138
      %s140 = sphi 0, %s138
      %s141 = sphi 0, %s140
      %s155 = sphi 0, %s141
      %s159 = sphi 0, %s159
      %s161 = sphi 0, %s159
      %s162 = sphi 0, %s161
      %s176 = sphi 0, %s162
      %s180 = sphi 0, %s180
      %s182 = sphi 0, %s180
      %s183 = sphi 0, %s182
      %s197 = sphi 0, %s183
      %s201 = sphi 0, %s201
      %s203 = sphi 0, %s201
      %s204 = sphi 0, %s203
      %s218 = sphi 0, %s204
      %s222 = sphi 0, %s222
      %s224 = sphi 0, %s222
      %s225 = sphi 0, %s224
      %s239 = sphi 0, %s225
      %s243 = sphi 0, %s243
      %s245 = sphi 0, %s243
      %s246 = sphi 0, %s245
      %s260 = sphi 0, %s246
      %s264 = sphi 0, %s264
      %s266 = sphi 0, %s264
      %s267 = sphi 0, %s266
      %s281 = sphi 0, %s267
      %s285 = sphi 0, %s285
      %s287 = sphi 0, %s285
      %s288 = sphi 0, %s287
      %s302 = sphi 0, %s288
      %s306 = sphi 0, %s306
      %s308 = sphi 0, %s306
      %s309 = sphi 0, %s308
      %s323 = sphi 0, %s309
      %s327 = sphi 0, %s327
      %s329 = sphi 0, %s327
      %s330 = sphi 0, %s329
      %s344 = sphi 0, %s330
      %s348 = sphi 0, %s348
      %s350 = sphi 0, %s348
      %s351 = sphi 0, %s350
      %s365 = sphi 0, %s351
      %s369 = sphi 0, %s369
      %s371 = sphi 0, %s369
      %s372 = sphi 0, %s371
      %s386 = sphi 0, %s372
      %s390 = sphi 0, %s390
      %s392 = sphi 0, %s390
      %s393 = sphi 0, %s392
      %s407 = sphi 0, %s393
      %s411 = sphi 0, %s411
      %s413 = sphi 0, %s411
      %s414 = sphi 0, %s413
      %s428 = sphi 0, %s414
      %s434 = sphi 0, %s436
      %s437 = sphi 0, %s434
      %s438 = sphi 0, %s437
      %s454 = sphi 0, %s438
    $region4: #{tpu_custom_call.1} parent=1 // loop_header_branch
      %39 = sbr.rel (%p37) target = $region8
    $region5: #{tpu_custom_call.1} parent=1 // loop_body
      %s41 = ssub.s32 %s36, 1
      %s42 = ssub.s32 %s36, 2
      %s43 = sadd.s32 %s36, 1
      %s44 = ssub.s32 %s36, %s43
      %p45 = scmp.eq.s32.totalorder %s44, 0
      %s47 = sadd.s32 %s46, 1
      %s48 = scalar_select %p45, %s46, %s47
      %p51 = pneg %p45
      %p52 = scmp.eq.s32.totalorder %s36, 1
      %p53 = por %p51, %p52
      %p54 = scmp.ne.s32.totalorder %s46, %s49
      %p55 = scmp.eq.s32.totalorder %s36, 0
      %p56 = por %p54, %p55
      %p57 = scmp.ne.s32.totalorder %s46, %s49
      %p58 = scmp.eq.s32.totalorder %s41, 1
      %p59 = por %p57, %p58
      %p60 = scmp.ne.s32.totalorder %s49, %s50
      %p61 = scmp.eq.s32.totalorder %s41, 0
      %p62 = por %p60, %p61
      %p63 = scmp.ne.s32.totalorder %s49, %s50
      %p64 = scmp.eq.s32.totalorder %s42, 1
      %p65 = por %p63, %p64
      %p67 = scmp.ne.s32.totalorder %s50, %s66
      %p68 = scmp.eq.s32.totalorder %s42, 0
      %p69 = por %p67, %p68
      %s70 = ssub.s32 %s36, %s43
      %p71 = scmp.eq.s32.totalorder %s70, 0
      %s73 = sadd.s32 %s72, 1
      %s74 = scalar_select %p71, %s72, %s73
      %p77 = pneg %p71
      %p78 = scmp.eq.s32.totalorder %s36, 1
      %p79 = por %p77, %p78
      %p80 = scmp.ne.s32.totalorder %s72, %s75
      %p81 = scmp.eq.s32.totalorder %s36, 0
      %p82 = por %p80, %p81
      %p83 = scmp.ne.s32.totalorder %s72, %s75
      %p84 = scmp.eq.s32.totalorder %s41, 1
      %p85 = por %p83, %p84
      %p86 = scmp.ne.s32.totalorder %s75, %s76
      %p87 = scmp.eq.s32.totalorder %s41, 0
      %p88 = por %p86, %p87
      %p89 = scmp.ne.s32.totalorder %s75, %s76
      %p90 = scmp.eq.s32.totalorder %s42, 1
      %p91 = por %p89, %p90
      %p93 = scmp.ne.s32.totalorder %s76, %s92
      %p94 = scmp.eq.s32.totalorder %s42, 0
      %p95 = por %p93, %p94
      %s97 = sadd.s32 %s96, 1
      %p100 = scmp.eq.s32.totalorder %s36, 1
      %p101 = scmp.ne.s32.totalorder %s96, %s98
      %p102 = scmp.eq.s32.totalorder %s36, 0
      %p103 = por %p101, %p102
      %p104 = scmp.ne.s32.totalorder %s96, %s98
      %p105 = scmp.eq.s32.totalorder %s41, 1
      %p106 = por %p104, %p105
      %p107 = scmp.ne.s32.totalorder %s98, %s99
      %p108 = scmp.eq.s32.totalorder %s41, 0
      %p109 = por %p107, %p108
      %p110 = scmp.ne.s32.totalorder %s98, %s99
      %p111 = scmp.eq.s32.totalorder %s42, 1
      %p112 = por %p110, %p111
      %p114 = scmp.ne.s32.totalorder %s99, %s113
      %p115 = scmp.eq.s32.totalorder %s42, 0
      %p116 = por %p114, %p115
      %s118 = sadd.s32 %s117, 1
      %p121 = scmp.eq.s32.totalorder %s36, 1
      %p122 = scmp.ne.s32.totalorder %s117, %s119
      %p123 = scmp.eq.s32.totalorder %s36, 0
      %p124 = por %p122, %p123
      %p125 = scmp.ne.s32.totalorder %s117, %s119
      %p126 = scmp.eq.s32.totalorder %s41, 1
      %p127 = por %p125, %p126
      %p128 = scmp.ne.s32.totalorder %s119, %s120
      %p129 = scmp.eq.s32.totalorder %s41, 0
      %p130 = por %p128, %p129
      %p131 = scmp.ne.s32.totalorder %s119, %s120
      %p132 = scmp.eq.s32.totalorder %s42, 1
      %p133 = por %p131, %p132
      %p135 = scmp.ne.s32.totalorder %s120, %s134
      %p136 = scmp.eq.s32.totalorder %s42, 0
      %p137 = por %p135, %p136
      %s139 = sadd.s32 %s138, 1
      %p142 = scmp.eq.s32.totalorder %s36, 1
      %p143 = scmp.ne.s32.totalorder %s138, %s140
      %p144 = scmp.eq.s32.totalorder %s36, 0
      %p145 = por %p143, %p144
      %p146 = scmp.ne.s32.totalorder %s138, %s140
      %p147 = scmp.eq.s32.totalorder %s41, 1
      %p148 = por %p146, %p147
      %p149 = scmp.ne.s32.totalorder %s140, %s141
      %p150 = scmp.eq.s32.totalorder %s41, 0
      %p151 = por %p149, %p150
      %p152 = scmp.ne.s32.totalorder %s140, %s141
      %p153 = scmp.eq.s32.totalorder %s42, 1
      %p154 = por %p152, %p153
      %p156 = scmp.ne.s32.totalorder %s141, %s155
      %p157 = scmp.eq.s32.totalorder %s42, 0
      %p158 = por %p156, %p157
      %s160 = sadd.s32 %s159, 1
      %p163 = scmp.eq.s32.totalorder %s36, 1
      %p164 = scmp.ne.s32.totalorder %s159, %s161
      %p165 = scmp.eq.s32.totalorder %s36, 0
      %p166 = por %p164, %p165
      %p167 = scmp.ne.s32.totalorder %s159, %s161
      %p168 = scmp.eq.s32.totalorder %s41, 1
      %p169 = por %p167, %p168
      %p170 = scmp.ne.s32.totalorder %s161, %s162
      %p171 = scmp.eq.s32.totalorder %s41, 0
      %p172 = por %p170, %p171
      %p173 = scmp.ne.s32.totalorder %s161, %s162
      %p174 = scmp.eq.s32.totalorder %s42, 1
      %p175 = por %p173, %p174
      %p177 = scmp.ne.s32.totalorder %s162, %s176
      %p178 = scmp.eq.s32.totalorder %s42, 0
      %p179 = por %p177, %p178
      %s181 = sadd.s32 %s180, 1
      %p184 = scmp.eq.s32.totalorder %s36, 1
      %p185 = scmp.ne.s32.totalorder %s180, %s182
      %p186 = scmp.eq.s32.totalorder %s36, 0
      %p187 = por %p185, %p186
      %p188 = scmp.ne.s32.totalorder %s180, %s182
      %p189 = scmp.eq.s32.totalorder %s41, 1
      %p190 = por %p188, %p189
      %p191 = scmp.ne.s32.totalorder %s182, %s183
      %p192 = scmp.eq.s32.totalorder %s41, 0
      %p193 = por %p191, %p192
      %p194 = scmp.ne.s32.totalorder %s182, %s183
      %p195 = scmp.eq.s32.totalorder %s42, 1
      %p196 = por %p194, %p195
      %p198 = scmp.ne.s32.totalorder %s183, %s197
      %p199 = scmp.eq.s32.totalorder %s42, 0
      %p200 = por %p198, %p199
      %s202 = sadd.s32 %s201, 1
      %p205 = scmp.eq.s32.totalorder %s36, 1
      %p206 = scmp.ne.s32.totalorder %s201, %s203
      %p207 = scmp.eq.s32.totalorder %s36, 0
      %p208 = por %p206, %p207
      %p209 = scmp.ne.s32.totalorder %s201, %s203
      %p210 = scmp.eq.s32.totalorder %s41, 1
      %p211 = por %p209, %p210
      %p212 = scmp.ne.s32.totalorder %s203, %s204
      %p213 = scmp.eq.s32.totalorder %s41, 0
      %p214 = por %p212, %p213
      %p215 = scmp.ne.s32.totalorder %s203, %s204
      %p216 = scmp.eq.s32.totalorder %s42, 1
      %p217 = por %p215, %p216
      %p219 = scmp.ne.s32.totalorder %s204, %s218
      %p220 = scmp.eq.s32.totalorder %s42, 0
      %p221 = por %p219, %p220
      %s223 = sadd.s32 %s222, 1
      %p226 = scmp.eq.s32.totalorder %s36, 1
      %p227 = scmp.ne.s32.totalorder %s222, %s224
      %p228 = scmp.eq.s32.totalorder %s36, 0
      %p229 = por %p227, %p228
      %p230 = scmp.ne.s32.totalorder %s222, %s224
      %p231 = scmp.eq.s32.totalorder %s41, 1
      %p232 = por %p230, %p231
      %p233 = scmp.ne.s32.totalorder %s224, %s225
      %p234 = scmp.eq.s32.totalorder %s41, 0
      %p235 = por %p233, %p234
      %p236 = scmp.ne.s32.totalorder %s224, %s225
      %p237 = scmp.eq.s32.totalorder %s42, 1
      %p238 = por %p236, %p237
      %p240 = scmp.ne.s32.totalorder %s225, %s239
      %p241 = scmp.eq.s32.totalorder %s42, 0
      %p242 = por %p240, %p241
      %s244 = sadd.s32 %s243, 1
      %p247 = scmp.eq.s32.totalorder %s36, 1
      %p248 = scmp.ne.s32.totalorder %s243, %s245
      %p249 = scmp.eq.s32.totalorder %s36, 0
      %p250 = por %p248, %p249
      %p251 = scmp.ne.s32.totalorder %s243, %s245
      %p252 = scmp.eq.s32.totalorder %s41, 1
      %p253 = por %p251, %p252
      %p254 = scmp.ne.s32.totalorder %s245, %s246
      %p255 = scmp.eq.s32.totalorder %s41, 0
      %p256 = por %p254, %p255
      %p257 = scmp.ne.s32.totalorder %s245, %s246
      %p258 = scmp.eq.s32.totalorder %s42, 1
      %p259 = por %p257, %p258
      %p261 = scmp.ne.s32.totalorder %s246, %s260
      %p262 = scmp.eq.s32.totalorder %s42, 0
      %p263 = por %p261, %p262
      %s265 = sadd.s32 %s264, 1
      %p268 = scmp.eq.s32.totalorder %s36, 1
      %p269 = scmp.ne.s32.totalorder %s264, %s266
      %p270 = scmp.eq.s32.totalorder %s36, 0
      %p271 = por %p269, %p270
      %p272 = scmp.ne.s32.totalorder %s264, %s266
      %p273 = scmp.eq.s32.totalorder %s41, 1
      %p274 = por %p272, %p273
      %p275 = scmp.ne.s32.totalorder %s266, %s267
      %p276 = scmp.eq.s32.totalorder %s41, 0
      %p277 = por %p275, %p276
      %p278 = scmp.ne.s32.totalorder %s266, %s267
      %p279 = scmp.eq.s32.totalorder %s42, 1
      %p280 = por %p278, %p279
      %p282 = scmp.ne.s32.totalorder %s267, %s281
      %p283 = scmp.eq.s32.totalorder %s42, 0
      %p284 = por %p282, %p283
      %s286 = sadd.s32 %s285, 1
      %p289 = scmp.eq.s32.totalorder %s36, 1
      %p290 = scmp.ne.s32.totalorder %s285, %s287
      %p291 = scmp.eq.s32.totalorder %s36, 0
      %p292 = por %p290, %p291
      %p293 = scmp.ne.s32.totalorder %s285, %s287
      %p294 = scmp.eq.s32.totalorder %s41, 1
      %p295 = por %p293, %p294
      %p296 = scmp.ne.s32.totalorder %s287, %s288
      %p297 = scmp.eq.s32.totalorder %s41, 0
      %p298 = por %p296, %p297
      %p299 = scmp.ne.s32.totalorder %s287, %s288
      %p300 = scmp.eq.s32.totalorder %s42, 1
      %p301 = por %p299, %p300
      %p303 = scmp.ne.s32.totalorder %s288, %s302
      %p304 = scmp.eq.s32.totalorder %s42, 0
      %p305 = por %p303, %p304
      %s307 = sadd.s32 %s306, 1
      %p310 = scmp.eq.s32.totalorder %s36, 1
      %p311 = scmp.ne.s32.totalorder %s306, %s308
      %p312 = scmp.eq.s32.totalorder %s36, 0
      %p313 = por %p311, %p312
      %p314 = scmp.ne.s32.totalorder %s306, %s308
      %p315 = scmp.eq.s32.totalorder %s41, 1
      %p316 = por %p314, %p315
      %p317 = scmp.ne.s32.totalorder %s308, %s309
      %p318 = scmp.eq.s32.totalorder %s41, 0
      %p319 = por %p317, %p318
      %p320 = scmp.ne.s32.totalorder %s308, %s309
      %p321 = scmp.eq.s32.totalorder %s42, 1
      %p322 = por %p320, %p321
      %p324 = scmp.ne.s32.totalorder %s309, %s323
      %p325 = scmp.eq.s32.totalorder %s42, 0
      %p326 = por %p324, %p325
      %s328 = sadd.s32 %s327, 1
      %p331 = scmp.eq.s32.totalorder %s36, 1
      %p332 = scmp.ne.s32.totalorder %s327, %s329
      %p333 = scmp.eq.s32.totalorder %s36, 0
      %p334 = por %p332, %p333
      %p335 = scmp.ne.s32.totalorder %s327, %s329
      %p336 = scmp.eq.s32.totalorder %s41, 1
      %p337 = por %p335, %p336
      %p338 = scmp.ne.s32.totalorder %s329, %s330
      %p339 = scmp.eq.s32.totalorder %s41, 0
      %p340 = por %p338, %p339
      %p341 = scmp.ne.s32.totalorder %s329, %s330
      %p342 = scmp.eq.s32.totalorder %s42, 1
      %p343 = por %p341, %p342
      %p345 = scmp.ne.s32.totalorder %s330, %s344
      %p346 = scmp.eq.s32.totalorder %s42, 0
      %p347 = por %p345, %p346
      %s349 = sadd.s32 %s348, 1
      %p352 = scmp.eq.s32.totalorder %s36, 1
      %p353 = scmp.ne.s32.totalorder %s348, %s350
      %p354 = scmp.eq.s32.totalorder %s36, 0
      %p355 = por %p353, %p354
      %p356 = scmp.ne.s32.totalorder %s348, %s350
      %p357 = scmp.eq.s32.totalorder %s41, 1
      %p358 = por %p356, %p357
      %p359 = scmp.ne.s32.totalorder %s350, %s351
      %p360 = scmp.eq.s32.totalorder %s41, 0
      %p361 = por %p359, %p360
      %p362 = scmp.ne.s32.totalorder %s350, %s351
      %p363 = scmp.eq.s32.totalorder %s42, 1
      %p364 = por %p362, %p363
      %p366 = scmp.ne.s32.totalorder %s351, %s365
      %p367 = scmp.eq.s32.totalorder %s42, 0
      %p368 = por %p366, %p367
      %s370 = sadd.s32 %s369, 1
      %p373 = scmp.eq.s32.totalorder %s36, 1
      %p374 = scmp.ne.s32.totalorder %s369, %s371
      %p375 = scmp.eq.s32.totalorder %s36, 0
      %p376 = por %p374, %p375
      %p377 = scmp.ne.s32.totalorder %s369, %s371
      %p378 = scmp.eq.s32.totalorder %s41, 1
      %p379 = por %p377, %p378
      %p380 = scmp.ne.s32.totalorder %s371, %s372
      %p381 = scmp.eq.s32.totalorder %s41, 0
      %p382 = por %p380, %p381
      %p383 = scmp.ne.s32.totalorder %s371, %s372
      %p384 = scmp.eq.s32.totalorder %s42, 1
      %p385 = por %p383, %p384
      %p387 = scmp.ne.s32.totalorder %s372, %s386
      %p388 = scmp.eq.s32.totalorder %s42, 0
      %p389 = por %p387, %p388
      %s391 = sadd.s32 %s390, 1
      %p394 = scmp.eq.s32.totalorder %s36, 1
      %p395 = scmp.ne.s32.totalorder %s390, %s392
      %p396 = scmp.eq.s32.totalorder %s36, 0
      %p397 = por %p395, %p396
      %p398 = scmp.ne.s32.totalorder %s390, %s392
      %p399 = scmp.eq.s32.totalorder %s41, 1
      %p400 = por %p398, %p399
      %p401 = scmp.ne.s32.totalorder %s392, %s393
      %p402 = scmp.eq.s32.totalorder %s41, 0
      %p403 = por %p401, %p402
      %p404 = scmp.ne.s32.totalorder %s392, %s393
      %p405 = scmp.eq.s32.totalorder %s42, 1
      %p406 = por %p404, %p405
      %p408 = scmp.ne.s32.totalorder %s393, %s407
      %p409 = scmp.eq.s32.totalorder %s42, 0
      %p410 = por %p408, %p409
      %s412 = sadd.s32 %s411, 1
      %p415 = scmp.eq.s32.totalorder %s36, 1
      %p416 = scmp.ne.s32.totalorder %s411, %s413
      %p417 = scmp.eq.s32.totalorder %s36, 0
      %p418 = por %p416, %p417
      %p419 = scmp.ne.s32.totalorder %s411, %s413
      %p420 = scmp.eq.s32.totalorder %s41, 1
      %p421 = por %p419, %p420
      %p422 = scmp.ne.s32.totalorder %s413, %s414
      %p423 = scmp.eq.s32.totalorder %s41, 0
      %p424 = por %p422, %p423
      %p425 = scmp.ne.s32.totalorder %s413, %s414
      %p426 = scmp.eq.s32.totalorder %s42, 1
      %p427 = por %p425, %p426
      %p429 = scmp.ne.s32.totalorder %s414, %s428
      %p430 = scmp.eq.s32.totalorder %s42, 0
      %p431 = por %p429, %p430
      %s432 = ssub.s32 %s36, %s43
      %p433 = scmp.eq.s32.totalorder %s432, 0
      %s435 = sadd.s32 %s434, 1
      %s436 = scalar_select %p433, %s434, %s435
      %p439 = pneg %p433
      %p440 = scmp.eq.s32.totalorder %s36, 1
      %p441 = por %p439, %p440
      %p442 = scmp.ne.s32.totalorder %s434, %s437
      %p443 = scmp.eq.s32.totalorder %s36, 0
      %p444 = por %p442, %p443
      %p445 = scmp.ne.s32.totalorder %s434, %s437
      %p446 = scmp.eq.s32.totalorder %s41, 1
      %p447 = por %p445, %p446
      %p448 = scmp.ne.s32.totalorder %s437, %s438
      %p449 = scmp.eq.s32.totalorder %s41, 0
      %p450 = por %p448, %p449
      %p451 = scmp.ne.s32.totalorder %s437, %s438
      %p452 = scmp.eq.s32.totalorder %s42, 1
      %p453 = por %p451, %p452
      %p455 = scmp.ne.s32.totalorder %s438, %s454
      %p456 = scmp.eq.s32.totalorder %s42, 0
      %p457 = por %p455, %p456
      %p458 = scmp.le.s32.totalorder 1, %s36
      %p459 = scmp.lt.s32.totalorder %s36, 3
      %p460 = pnand %p458, %p459
      %p461 = pneg %p460
      // Predicated region
      $region9: #{tpu_custom_call.1} parent=5 // pred_check
        _
      $region10: #{tpu_custom_call.1} parent=5 // pred_check_branch
        %463 = sbr.rel (%p460) target = $region12
      $region11: #{tpu_custom_call.1} parent=5 // pred_region
        %s464 = ssub.s32 %s36, 1
        // Predicated region
        $region13: #{tpu_custom_call.1} parent=11 // pred_check
          %p465 = pneg %p109
        $region14: #{tpu_custom_call.1} parent=11 // pred_check_branch
          %467 = sbr.rel (%p465) target = $region16
        $region15: #{tpu_custom_call.1} parent=11 // pred_region
          _
        $region16: #{tpu_custom_call.1} parent=11 // pred_fallthru
          _
        // Predicated region
        $region17: #{tpu_custom_call.1} parent=11 // pred_check
          %p468 = pneg %p130
        $region18: #{tpu_custom_call.1} parent=11 // pred_check_branch
          %470 = sbr.rel (%p468) target = $region20
        $region19: #{tpu_custom_call.1} parent=11 // pred_region
          _
        $region20: #{tpu_custom_call.1} parent=11 // pred_fallthru
          _
        // Predicated region
        $region21: #{tpu_custom_call.1} parent=11 // pred_check
          %p471 = pneg %p151
        $region22: #{tpu_custom_call.1} parent=11 // pred_check_branch
          %473 = sbr.rel (%p471) target = $region24
        $region23: #{tpu_custom_call.1} parent=11 // pred_region
          %s475 = ssub.s32 16, 16
          %476 = vsyncadd [#allocation6], %s475
          %s478 = sshll.u32 [#allocation7], 4
          %s479 = int_to_ptr.vmem [resolvable:$true] %s478
          %481 = dma.hbm_to_vmem [thread:$0]  %s4, 16, %s479, [#allocation6]
        $region24: #{tpu_custom_call.1} parent=11 // pred_fallthru
          _
        // Predicated region
        $region25: #{tpu_custom_call.1} parent=11 // pred_check
          %p482 = pneg %p172
        $region26: #{tpu_custom_call.1} parent=11 // pred_check_branch
          %484 = sbr.rel (%p482) target = $region28
        $region27: #{tpu_custom_call.1} parent=11 // pred_region
          %s486 = ssub.s32 16, 16
          %487 = vsyncadd [#allocation9], %s486
          %s489 = sshll.u32 [#allocation8], 4
          %s490 = int_to_ptr.vmem [resolvable:$true] %s489
          %492 = dma.hbm_to_vmem [thread:$0]  %s5, 16, %s490, [#allocation9]
        $region28: #{tpu_custom_call.1} parent=11 // pred_fallthru
          _
        // Predicated region
        $region29: #{tpu_custom_call.1} parent=11 // pred_check
          %p493 = pneg %p193
        $region30: #{tpu_custom_call.1} parent=11 // pred_check_branch
          %495 = sbr.rel (%p493) target = $region32
        $region31: #{tpu_custom_call.1} parent=11 // pred_region
          _
        $region32: #{tpu_custom_call.1} parent=11 // pred_fallthru
          _
        // Predicated region
        $region33: #{tpu_custom_call.1} parent=11 // pred_check
          %p496 = pneg %p214
        $region34: #{tpu_custom_call.1} parent=11 // pred_check_branch
          %498 = sbr.rel (%p496) target = $region36
        $region35: #{tpu_custom_call.1} parent=11 // pred_region
          %s500 = ssub.s32 16, 16
          %501 = vsyncadd [#allocation9], %s500
          %s503 = sshll.u32 [#allocation10], 4
          %s504 = int_to_ptr.vmem [resolvable:$true] %s503
          %506 = dma.hbm_to_vmem [thread:$0]  %s7, 16, %s504, [#allocation9]
        $region36: #{tpu_custom_call.1} parent=11 // pred_fallthru
          _
        // Predicated region
        $region37: #{tpu_custom_call.1} parent=11 // pred_check
          %p507 = pneg %p235
        $region38: #{tpu_custom_call.1} parent=11 // pred_check_branch
          %509 = sbr.rel (%p507) target = $region40
        $region39: #{tpu_custom_call.1} parent=11 // pred_region
          _
        $region40: #{tpu_custom_call.1} parent=11 // pred_fallthru
          _
        // Predicated region
        $region41: #{tpu_custom_call.1} parent=11 // pred_check
          %p510 = pneg %p256
        $region42: #{tpu_custom_call.1} parent=11 // pred_check_branch
          %512 = sbr.rel (%p510) target = $region44
        $region43: #{tpu_custom_call.1} parent=11 // pred_region
          _
        $region44: #{tpu_custom_call.1} parent=11 // pred_fallthru
          _
        // Predicated region
        $region45: #{tpu_custom_call.1} parent=11 // pred_check
          %p513 = pneg %p277
        $region46: #{tpu_custom_call.1} parent=11 // pred_check_branch
          %515 = sbr.rel (%p513) target = $region48
        $region47: #{tpu_custom_call.1} parent=11 // pred_region
          _
        $region48: #{tpu_custom_call.1} parent=11 // pred_fallthru
          _
        // Predicated region
        $region49: #{tpu_custom_call.1} parent=11 // pred_check
          %p516 = pneg %p298
        $region50: #{tpu_custom_call.1} parent=11 // pred_check_branch
          %518 = sbr.rel (%p516) target = $region52
        $region51: #{tpu_custom_call.1} parent=11 // pred_region
          _
        $region52: #{tpu_custom_call.1} parent=11 // pred_fallthru
          _
        // Predicated region
        $region53: #{tpu_custom_call.1} parent=11 // pred_check
          %p519 = pneg %p319
        $region54: #{tpu_custom_call.1} parent=11 // pred_check_branch
          %521 = sbr.rel (%p519) target = $region56
        $region55: #{tpu_custom_call.1} parent=11 // pred_region
          %s523 = ssub.s32 16, 16
          %524 = vsyncadd [#allocation12], %s523
          %s526 = sshll.u32 [#allocation11], 4
          %s527 = int_to_ptr.vmem [resolvable:$true] %s526
          %529 = dma.hbm_to_vmem [thread:$0]  %s12, 16, %s527, [#allocation12]
        $region56: #{tpu_custom_call.1} parent=11 // pred_fallthru
          _
        // Predicated region
        $region57: #{tpu_custom_call.1} parent=11 // pred_check
          %p530 = pneg %p340
        $region58: #{tpu_custom_call.1} parent=11 // pred_check_branch
          %532 = sbr.rel (%p530) target = $region60
        $region59: #{tpu_custom_call.1} parent=11 // pred_region
          %s534 = ssub.s32 16, 16
          %535 = vsyncadd [#allocation12], %s534
          %s537 = sshll.u32 [#allocation13], 4
          %s538 = int_to_ptr.vmem [resolvable:$true] %s537
          %540 = dma.hbm_to_vmem [thread:$0]  %s13, 16, %s538, [#allocation12]
        $region60: #{tpu_custom_call.1} parent=11 // pred_fallthru
          _
        // Predicated region
        $region61: #{tpu_custom_call.1} parent=11 // pred_check
          %p541 = pneg %p361
        $region62: #{tpu_custom_call.1} parent=11 // pred_check_branch
          %543 = sbr.rel (%p541) target = $region64
        $region63: #{tpu_custom_call.1} parent=11 // pred_region
          _
        $region64: #{tpu_custom_call.1} parent=11 // pred_fallthru
          _
        // Predicated region
        $region65: #{tpu_custom_call.1} parent=11 // pred_check
          %p544 = pneg %p382
        $region66: #{tpu_custom_call.1} parent=11 // pred_check_branch
          %546 = sbr.rel (%p544) target = $region68
        $region67: #{tpu_custom_call.1} parent=11 // pred_region
          %s548 = ssub.s32 16, 16
          %549 = vsyncadd [#allocation15], %s548
          %s551 = sshll.u32 [#allocation14], 4
          %s552 = int_to_ptr.vmem [resolvable:$true] %s551
          %554 = dma.hbm_to_vmem [thread:$0]  %s15, 16, %s552, [#allocation15]
        $region68: #{tpu_custom_call.1} parent=11 // pred_fallthru
          _
        // Predicated region
        $region69: #{tpu_custom_call.1} parent=11 // pred_check
          %p555 = pneg %p403
        $region70: #{tpu_custom_call.1} parent=11 // pred_check_branch
          %557 = sbr.rel (%p555) target = $region72
        $region71: #{tpu_custom_call.1} parent=11 // pred_region
          _
        $region72: #{tpu_custom_call.1} parent=11 // pred_fallthru
          _
        // Predicated region
        $region73: #{tpu_custom_call.1} parent=11 // pred_check
          %p558 = pneg %p424
        $region74: #{tpu_custom_call.1} parent=11 // pred_check_branch
          %560 = sbr.rel (%p558) target = $region76
        $region75: #{tpu_custom_call.1} parent=11 // pred_region
          _
        $region76: #{tpu_custom_call.1} parent=11 // pred_fallthru
          _
      $region12: #{tpu_custom_call.1} parent=5 // pred_fallthru
        _
      %p561 = scmp.lt.s32.totalorder %s36, 2
      // Predicated region
      $region77: #{tpu_custom_call.1} parent=5 // pred_check
        %p562 = pneg %p561
      $region78: #{tpu_custom_call.1} parent=5 // pred_check_branch
        %564 = sbr.rel (%p562) target = $region80
      $region79: #{tpu_custom_call.1} parent=5 // pred_region
        // Predicated region
        $region81: #{tpu_custom_call.1} parent=79 // pred_check
          %p565 = pneg %p56
        $region82: #{tpu_custom_call.1} parent=79 // pred_check_branch
          %567 = sbr.rel (%p565) target = $region84
        $region83: #{tpu_custom_call.1} parent=79 // pred_region
          %s568 = sand.u32 %s46, 1
          %s569 = scalar_lea.sflag [#allocation3], %s568
          %s570 = sand.u32 %s46, 1
          %s571 = smul.addr %s570, 8
          %s572 = scalar_lea.vmem [#allocation2], %s571
          %s574 = ssub.s32 128, 128
          %575 = vsyncadd %s569, %s574
          %s576 = smul.addr %s36, 128
          %s577 = scalar_lea.hbm %s0, %s576
          %s579 = sshll.u32 %s572, 4
          %s580 = int_to_ptr.vmem [resolvable:$true] %s579
          %582 = dma.hbm_to_vmem [thread:$0]  %s577, 128, %s580, %s569
        $region84: #{tpu_custom_call.1} parent=79 // pred_fallthru
          _
        // Predicated region
        $region85: #{tpu_custom_call.1} parent=79 // pred_check
          %p583 = pneg %p82
        $region86: #{tpu_custom_call.1} parent=79 // pred_check_branch
          %585 = sbr.rel (%p583) target = $region88
        $region87: #{tpu_custom_call.1} parent=79 // pred_region
          %s586 = sand.u32 %s36, 1
          %s587 = scalar_lea.sflag [#allocation6], %s586
          %s588 = sand.u32 %s72, 1
          %s589 = smul.addr %s588, 8
          %s590 = scalar_lea.vmem [#allocation5], %s589
          %s592 = ssub.s32 128, 128
          %593 = vsyncadd %s587, %s592
          %s594 = smul.addr %s36, 128
          %s595 = scalar_lea.hbm %s1, %s594
          %s597 = sshll.u32 %s590, 4
          %s598 = int_to_ptr.vmem [resolvable:$true] %s597
          %600 = dma.hbm_to_vmem [thread:$0]  %s595, 128, %s598, %s587
        $region88: #{tpu_custom_call.1} parent=79 // pred_fallthru
          _
      $region80: #{tpu_custom_call.1} parent=5 // pred_fallthru
        _
      %p601 = scmp.le.s32.totalorder 1, %s36
      %p602 = scmp.lt.s32.totalorder %s36, 3
      %p603 = pnand %p601, %p602
      %p604 = pneg %p603
      // Predicated region
      $region89: #{tpu_custom_call.1} parent=5 // pred_check
        _
      $region90: #{tpu_custom_call.1} parent=5 // pred_check_branch
        %606 = sbr.rel (%p603) target = $region92
      $region91: #{tpu_custom_call.1} parent=5 // pred_region
        %s607 = ssub.s32 %s36, 1
        %s608 = sand.u32 %s49, 1
        %s609 = scalar_lea.sflag [#allocation3], %s608
        %s610 = sand.u32 %s49, 1
        %s611 = smul.addr %s610, 8
        %s612 = scalar_lea.vmem [#allocation2], %s611
        // Predicated region
        $region93: #{tpu_custom_call.1} parent=91 // pred_check
          %p613 = pneg %p62
        $region94: #{tpu_custom_call.1} parent=91 // pred_check_branch
          %615 = sbr.rel (%p613) target = $region96
        $region95: #{tpu_custom_call.1} parent=91 // pred_region
          %616 = dma.done %s609, 128
        $region96: #{tpu_custom_call.1} parent=91 // pred_fallthru
          _
        %s617 = sand.u32 %s41, 1
        %s618 = scalar_lea.sflag [#allocation6], %s617
        %s619 = sand.u32 %s75, 1
        %s620 = smul.addr %s619, 8
        %s621 = scalar_lea.vmem [#allocation5], %s620
        // Predicated region
        $region97: #{tpu_custom_call.1} parent=91 // pred_check
          %p622 = pneg %p88
        $region98: #{tpu_custom_call.1} parent=91 // pred_check_branch
          %624 = sbr.rel (%p622) target = $region100
        $region99: #{tpu_custom_call.1} parent=91 // pred_region
          %625 = dma.done %s618, 128
        $region100: #{tpu_custom_call.1} parent=91 // pred_fallthru
          _
        // Predicated region
        $region101: #{tpu_custom_call.1} parent=91 // pred_check
          %p626 = pneg %p151
        $region102: #{tpu_custom_call.1} parent=91 // pred_check_branch
          %628 = sbr.rel (%p626) target = $region104
        $region103: #{tpu_custom_call.1} parent=91 // pred_region
          %629 = dma.done [#allocation6], 16
        $region104: #{tpu_custom_call.1} parent=91 // pred_fallthru
          _
        // Predicated region
        $region105: #{tpu_custom_call.1} parent=91 // pred_check
          %p630 = pneg %p172
        $region106: #{tpu_custom_call.1} parent=91 // pred_check_branch
          %632 = sbr.rel (%p630) target = $region108
        $region107: #{tpu_custom_call.1} parent=91 // pred_region
          %633 = dma.done [#allocation9], 16
        $region108: #{tpu_custom_call.1} parent=91 // pred_fallthru
          _
        // Predicated region
        $region109: #{tpu_custom_call.1} parent=91 // pred_check
          %p634 = pneg %p214
        $region110: #{tpu_custom_call.1} parent=91 // pred_check_branch
          %636 = sbr.rel (%p634) target = $region112
        $region111: #{tpu_custom_call.1} parent=91 // pred_region
          %637 = dma.done [#allocation9], 16
        $region112: #{tpu_custom_call.1} parent=91 // pred_fallthru
          _
        // Predicated region
        $region113: #{tpu_custom_call.1} parent=91 // pred_check
          %p638 = pneg %p319
        $region114: #{tpu_custom_call.1} parent=91 // pred_check_branch
          %640 = sbr.rel (%p638) target = $region116
        $region115: #{tpu_custom_call.1} parent=91 // pred_region
          %641 = dma.done [#allocation12], 16
        $region116: #{tpu_custom_call.1} parent=91 // pred_fallthru
          _
        // Predicated region
        $region117: #{tpu_custom_call.1} parent=91 // pred_check
          %p642 = pneg %p340
        $region118: #{tpu_custom_call.1} parent=91 // pred_check_branch
          %644 = sbr.rel (%p642) target = $region120
        $region119: #{tpu_custom_call.1} parent=91 // pred_region
          %645 = dma.done [#allocation12], 16
        $region120: #{tpu_custom_call.1} parent=91 // pred_fallthru
          _
        // Predicated region
        $region121: #{tpu_custom_call.1} parent=91 // pred_check
          %p646 = pneg %p382
        $region122: #{tpu_custom_call.1} parent=91 // pred_check_branch
          %648 = sbr.rel (%p646) target = $region124
        $region123: #{tpu_custom_call.1} parent=91 // pred_region
          %649 = dma.done [#allocation15], 16
        $region124: #{tpu_custom_call.1} parent=91 // pred_fallthru
          _
        %s650 = sand.u32 %s49, 1
        %s651 = scalar_lea.sflag [#allocation3], %s650
        %s652 = sand.u32 %s49, 1
        %s653 = smul.addr %s652, 8
        %s654 = scalar_lea.vmem [#allocation2], %s653
        %p655 = pneg %p62
        %p656 = pneg %p59
        %s657 = sand.u32 %s41, 1
        %s658 = scalar_lea.sflag [#allocation6], %s657
        %s659 = sand.u32 %s75, 1
        %s660 = smul.addr %s659, 8
        %s661 = scalar_lea.vmem [#allocation5], %s660
        %p662 = pneg %p88
        %p663 = pneg %p85
        %p664 = pneg %p109
        %p665 = pneg %p106
        %p666 = pneg %p130
        %p667 = pneg %p127
        %p668 = pneg %p151
        %p669 = pneg %p148
        %p670 = pneg %p172
        %p671 = pneg %p169
        %p672 = pneg %p193
        %p673 = pneg %p190
        %p674 = pneg %p214
        %p675 = pneg %p211
        %p676 = pneg %p235
        %p677 = pneg %p232
        %p678 = pneg %p256
        %p679 = pneg %p253
        %p680 = pneg %p277
        %p681 = pneg %p274
        %p682 = pneg %p298
        %p683 = pneg %p295
        %p684 = pneg %p319
        %p685 = pneg %p316
        %p686 = pneg %p340
        %p687 = pneg %p337
        %p688 = pneg %p361
        %p689 = pneg %p358
        %p690 = pneg %p382
        %p691 = pneg %p379
        %p692 = pneg %p403
        %p693 = pneg %p400
        %p694 = pneg %p424
        %p695 = pneg %p421
        %p696 = pneg %p450
        %p697 = pneg %p447
        %s698 = sand.u32 %s437, 1
        %s699 = scalar_lea.sflag [#allocation4], %s698
        %s700 = sand.u32 %s437, 1
        %s701 = smul.addr %s700, 8
        %s702 = scalar_lea.vmem [#allocation16], %s701
        %v703 = vld [vmem:[%s612] sm:$0xff]
        %v704 = vld [vmem:[%s2] sm:$0x1]
        %v705 = vld [vmem:[%s3] sm:$0x1]
        %vm706 = vcmask 261120
        %v707 = vsel %vm706, %v703, 0.0
        %708 = vadd.xlane.f32.xlu0 %v707
        %v709 = vpop.xlane.xlu0 %708
        %v710 = vrcp.pop 32.0
        %v711 = vmul.f32 %v709, %v710
        %v712 = vsub.f32 %v703, %v711
        %v713 = vmul.f32 %v712, %v712
        %v714 = vsel %vm706, %v713, 0.0
        %715 = vadd.xlane.f32.xlu0 %v714
        %v716 = vpop.xlane.xlu0 %715
        %v717 = vmul.f32 %v716, %v710
        %v718 = vadd.f32 %v717, 1e-05
        %v719 = vrsqrt.pop %v718
        %v720 = vmul.f32 %v712, %v719
        %v722 = vlaneseq
        %v723 = vshrl.u32 %v722, 7
        %v724 = vsub.s32 0, %v723
        %v725 = vrot.slane %v704, %v724
        %v727 = vmul.f32 %v720, %v725
        %v729 = vlaneseq
        %v730 = vshrl.u32 %v729, 7
        %v731 = vsub.s32 0, %v730
        %v732 = vrot.slane %v705, %v731
        %v734 = vadd.f32 %v727, %v732
        %v735 = vld [vmem:[%s621] sm:$0xff]
        %v736 = vld [vmem:[#allocation7] sm:$0x1]
        %v737 = vld [vmem:[#allocation8] sm:$0x1]
        %vm738 = vcmask 195584
        %v739 = vsel %vm738, %v735, 0.0
        %740 = vadd.xlane.f32.xlu0 %v739
        %v741 = vpop.xlane.xlu0 %740
        %v742 = vrcp.pop 24.0
        %v743 = vmul.f32 %v741, %v742
        %v744 = vsub.f32 %v735, %v743
        %v745 = vmul.f32 %v744, %v744
        %v746 = vsel %vm738, %v745, 0.0
        %747 = vadd.xlane.f32.xlu0 %v746
        %v748 = vpop.xlane.xlu0 %747
        %v749 = vmul.f32 %v748, %v742
        %v750 = vadd.f32 %v749, 1e-05
        %v751 = vrsqrt.pop %v750
        %v752 = vmul.f32 %v744, %v751
        %v754 = vlaneseq
        %v755 = vshrl.u32 %v754, 7
        %v756 = vsub.s32 0, %v755
        %v757 = vrot.slane %v736, %v756
        %v759 = vmul.f32 %v752, %v757
        %v761 = vlaneseq
        %v762 = vshrl.u32 %v761, 7
        %v763 = vsub.s32 0, %v762
        %v764 = vrot.slane %v737, %v763
        %v766 = vadd.f32 %v759, %v764
        %v767 = vld [vmem:[%s6] sm:$0xff]
        %v768 = vld [vmem:[%s6 + $0x8] sm:$0xff]
        %v769 = vld [vmem:[%s6 + $0x10] sm:$0xff]
        %v770 = vld [vmem:[%s6 + $0x18] sm:$0xff]
        %v771 = vld [vmem:[#allocation10] sm:$0x1]
        %v773 = vlaneseq
        %v774 = vshrl.u32 %v773, 7
        %v775 = vsub.s32 0, %v774
        %v776 = vrot.slane %v771, %v775
        %v779 = vsel %vm706, %v734, 0
        %781 = vmatprep.subr.mxu0 0.0
        %782 = vmatpush1.msra.mxu0 %v767
        %783 = vmatprep.subr.mxu0 0.0
        %784 = vmatpush1.msra.mxu0 %v768
        %785 = vmatprep.subr.mxu0 0.0
        %786 = vmatpush1.msra.mxu0 %v769
        %787 = vmatprep.subr.mxu0 0.0
        %788 = vmatpush1.msra.mxu0 %v770
        %789 = vmatprep.subr.mxu0 0.0
        %790 = vmatpush1.msra.mxu0 0.0
        %791 = vmatprep.subr.mxu0 0.0
        %792 = vmatpush1.msra.mxu0 0.0
        %793 = vmatprep.subr.mxu0 0.0
        %794 = vmatpush1.msra.mxu0 0.0
        %795 = vmatprep.subr.mxu0 0.0
        %796 = vmatpush1.msra.mxu0 0.0
        %797 = vmatprep.subr.mxu0 0.0
        %798 = vmatpush1.msra.mxu0 0.0
        %799 = vmatprep.subr.mxu0 0.0
        %800 = vmatpush1.msra.mxu0 0.0
        %801 = vmatprep.subr.mxu0 0.0
        %802 = vmatpush1.msra.mxu0 0.0
        %803 = vmatprep.subr.mxu0 0.0
        %804 = vmatpush1.msra.mxu0 0.0
        %805 = vmatprep.subr.mxu0 0.0
        %806 = vmatpush1.msra.mxu0 0.0
        %807 = vmatprep.subr.mxu0 0.0
        %808 = vmatpush1.msra.mxu0 0.0
        %809 = vmatprep.subr.mxu0 0.0
        %810 = vmatpush1.msra.mxu0 0.0
        %811 = vmatprep.subr.mxu0 0.0
        %812 = vmatpush1.msra.mxu0 0.0
        %813 = vmatprep.subr.mxu0 0.0
        %814 = vmatpush1.msra.mxu0 0.0
        %815 = vmatprep.subr.mxu0 0.0
        %816 = vmatpush1.msra.mxu0 0.0
        %817 = vmatprep.subr.mxu0 0.0
        %818 = vmatpush1.msra.mxu0 0.0
        %819 = vmatprep.subr.mxu0 0.0
        %820 = vmatpush1.msra.mxu0 0.0
        %821 = vmatprep.subr.mxu0 0.0
        %822 = vmatpush1.msra.mxu0 0.0
        %823 = vmatprep.subr.mxu0 0.0
        %824 = vmatpush1.msra.mxu0 0.0
        %825 = vmatprep.subr.mxu0 0.0
        %826 = vmatpush1.msra.mxu0 0.0
        %827 = vmatprep.subr.mxu0 0.0
        %828 = vmatpush1.msra.mxu0 0.0
        %829 = vmatprep.subr.mxu0 0.0
        %830 = vmatpush1.msra.mxu0 0.0
        %831 = vmatprep.subr.mxu0 0.0
        %832 = vmatpush1.msra.mxu0 0.0
        %833 = vmatprep.subr.mxu0 0.0
        %834 = vmatpush1.msra.mxu0 0.0
        %835 = vmatprep.subr.mxu0 0.0
        %836 = vmatpush1.msra.mxu0 0.0
        %837 = vmatprep.subr.mxu0 0.0
        %838 = vmatpush1.msra.mxu0 0.0
        %839 = vmatprep.subr.mxu0 0.0
        %840 = vmatpush1.msra.mxu0 0.0
        %841 = vmatprep.subr.mxu0 0.0
        %842 = vmatpush1.msra.mxu0 0.0
        %843 = vmatprep.subr.mxu0 0.0
        %844 = vmatpush1.msra.mxu0 0.0
        %845 = vmatprep.mubr.f32.mxu0 0.0
        %846 = vmatmul.mubr.f32.gmra.mrb[0].mxu0 %v779
        %v847 = vpop.f32.mrb[0].mxu0
        %v848 = vadd.f32 %v776, %v847
        %v849 = vpop.f32.mrb[0].mxu0
        %850 = vdwg.mxu0
        %v851 = vld [vmem:[%s8] sm:$0xff]
        %v852 = vld [vmem:[%s8 + $0x8] sm:$0xff]
        %v853 = vld [vmem:[%s8 + $0x10] sm:$0xff]
        %v854 = vld [vmem:[%s9] sm:$0x1]
        %v856 = vlaneseq
        %v857 = vshrl.u32 %v856, 7
        %v858 = vsub.s32 0, %v857
        %v859 = vrot.slane %v854, %v858
        %v862 = vsel %vm738, %v766, 0
        %864 = vmatprep.subr.mxu0 0.0
        %865 = vmatpush1.msra.mxu0 %v851
        %866 = vmatprep.subr.mxu0 0.0
        %867 = vmatpush1.msra.mxu0 %v852
        %868 = vmatprep.subr.mxu0 0.0
        %869 = vmatpush1.msra.mxu0 %v853
        %870 = vmatprep.subr.mxu0 0.0
        %871 = vmatpush1.msra.mxu0 0.0
        %872 = vmatprep.subr.mxu0 0.0
        %873 = vmatpush1.msra.mxu0 0.0
        %874 = vmatprep.subr.mxu0 0.0
        %875 = vmatpush1.msra.mxu0 0.0
        %876 = vmatprep.subr.mxu0 0.0
        %877 = vmatpush1.msra.mxu0 0.0
        %878 = vmatprep.subr.mxu0 0.0
        %879 = vmatpush1.msra.mxu0 0.0
        %880 = vmatprep.subr.mxu0 0.0
        %881 = vmatpush1.msra.mxu0 0.0
        %882 = vmatprep.subr.mxu0 0.0
        %883 = vmatpush1.msra.mxu0 0.0
        %884 = vmatprep.subr.mxu0 0.0
        %885 = vmatpush1.msra.mxu0 0.0
        %886 = vmatprep.subr.mxu0 0.0
        %887 = vmatpush1.msra.mxu0 0.0
        %888 = vmatprep.subr.mxu0 0.0
        %889 = vmatpush1.msra.mxu0 0.0
        %890 = vmatprep.subr.mxu0 0.0
        %891 = vmatpush1.msra.mxu0 0.0
        %892 = vmatprep.subr.mxu0 0.0
        %893 = vmatpush1.msra.mxu0 0.0
        %894 = vmatprep.subr.mxu0 0.0
        %895 = vmatpush1.msra.mxu0 0.0
        %896 = vmatprep.subr.mxu0 0.0
        %897 = vmatpush1.msra.mxu0 0.0
        %898 = vmatprep.subr.mxu0 0.0
        %899 = vmatpush1.msra.mxu0 0.0
        %900 = vmatprep.subr.mxu0 0.0
        %901 = vmatpush1.msra.mxu0 0.0
        %902 = vmatprep.subr.mxu0 0.0
        %903 = vmatpush1.msra.mxu0 0.0
        %904 = vmatprep.subr.mxu0 0.0
        %905 = vmatpush1.msra.mxu0 0.0
        %906 = vmatprep.subr.mxu0 0.0
        %907 = vmatpush1.msra.mxu0 0.0
        %908 = vmatprep.subr.mxu0 0.0
        %909 = vmatpush1.msra.mxu0 0.0
        %910 = vmatprep.subr.mxu0 0.0
        %911 = vmatpush1.msra.mxu0 0.0
        %912 = vmatprep.subr.mxu0 0.0
        %913 = vmatpush1.msra.mxu0 0.0
        %914 = vmatprep.subr.mxu0 0.0
        %915 = vmatpush1.msra.mxu0 0.0
        %916 = vmatprep.subr.mxu0 0.0
        %917 = vmatpush1.msra.mxu0 0.0
        %918 = vmatprep.subr.mxu0 0.0
        %919 = vmatpush1.msra.mxu0 0.0
        %920 = vmatprep.subr.mxu0 0.0
        %921 = vmatpush1.msra.mxu0 0.0
        %922 = vmatprep.subr.mxu0 0.0
        %923 = vmatpush1.msra.mxu0 0.0
        %924 = vmatprep.subr.mxu0 0.0
        %925 = vmatpush1.msra.mxu0 0.0
        %926 = vmatprep.subr.mxu0 0.0
        %927 = vmatpush1.msra.mxu0 0.0
        %928 = vmatprep.mubr.f32.mxu0 0.0
        %929 = vmatmul.mubr.f32.gmra.mrb[0].mxu0 %v862
        %v930 = vpop.f32.mrb[0].mxu0
        %v931 = vadd.f32 %v859, %v930
        %v932 = vpop.f32.mrb[0].mxu0
        %933 = vdwg.mxu0
        %v934 = vmul.f32 %v848, 0.35355338
        %vm935 = vcmask 64512
        %v937 = vsel %vm935, %v934, 0
        %v940 = vsel %vm935, %v931, 0
        %942 = vmatprep.subr.mxu0 0.0
        %943 = vmatpush1.xpose.msra.mxu0 %v940
        %944 = vmatprep.subr.mxu0 0.0
        %945 = vmatpush1.xpose.msra.mxu0 0.0
        %946 = vmatprep.subr.mxu0 0.0
        %947 = vmatpush1.xpose.msra.mxu0 0.0
        %948 = vmatprep.subr.mxu0 0.0
        %949 = vmatpush1.xpose.msra.mxu0 0.0
        %950 = vmatprep.subr.mxu0 0.0
        %951 = vmatpush1.xpose.msra.mxu0 0.0
        %952 = vmatprep.subr.mxu0 0.0
        %953 = vmatpush1.xpose.msra.mxu0 0.0
        %954 = vmatprep.subr.mxu0 0.0
        %955 = vmatpush1.xpose.msra.mxu0 0.0
        %956 = vmatprep.subr.mxu0 0.0
        %957 = vmatpush1.xpose.msra.mxu0 0.0
        %958 = vmatprep.subr.mxu0 0.0
        %959 = vmatpush1.xpose.msra.mxu0 0.0
        %960 = vmatprep.subr.mxu0 0.0
        %961 = vmatpush1.xpose.msra.mxu0 0.0
        %962 = vmatprep.subr.mxu0 0.0
        %963 = vmatpush1.xpose.msra.mxu0 0.0
        %964 = vmatprep.subr.mxu0 0.0
        %965 = vmatpush1.xpose.msra.mxu0 0.0
        %966 = vmatprep.subr.mxu0 0.0
        %967 = vmatpush1.xpose.msra.mxu0 0.0
        %968 = vmatprep.subr.mxu0 0.0
        %969 = vmatpush1.xpose.msra.mxu0 0.0
        %970 = vmatprep.subr.mxu0 0.0
        %971 = vmatpush1.xpose.msra.mxu0 0.0
        %972 = vmatprep.subr.mxu0 0.0
        %973 = vmatpush1.xpose.msra.mxu0 0.0
        %974 = vmatprep.subr.mxu0 0.0
        %975 = vmatpush1.xpose.msra.mxu0 0.0
        %976 = vmatprep.subr.mxu0 0.0
        %977 = vmatpush1.xpose.msra.mxu0 0.0
        %978 = vmatprep.subr.mxu0 0.0
        %979 = vmatpush1.xpose.msra.mxu0 0.0
        %980 = vmatprep.subr.mxu0 0.0
        %981 = vmatpush1.xpose.msra.mxu0 0.0
        %982 = vmatprep.subr.mxu0 0.0
        %983 = vmatpush1.xpose.msra.mxu0 0.0
        %984 = vmatprep.subr.mxu0 0.0
        %985 = vmatpush1.xpose.msra.mxu0 0.0
        %986 = vmatprep.subr.mxu0 0.0
        %987 = vmatpush1.xpose.msra.mxu0 0.0
        %988 = vmatprep.subr.mxu0 0.0
        %989 = vmatpush1.xpose.msra.mxu0 0.0
        %990 = vmatprep.subr.mxu0 0.0
        %991 = vmatpush1.xpose.msra.mxu0 0.0
        %992 = vmatprep.subr.mxu0 0.0
        %993 = vmatpush1.xpose.msra.mxu0 0.0
        %994 = vmatprep.subr.mxu0 0.0
        %995 = vmatpush1.xpose.msra.mxu0 0.0
        %996 = vmatprep.subr.mxu0 0.0
        %997 = vmatpush1.xpose.msra.mxu0 0.0
        %998 = vmatprep.subr.mxu0 0.0
        %999 = vmatpush1.xpose.msra.mxu0 0.0
        %1000 = vmatprep.subr.mxu0 0.0
        %1001 = vmatpush1.xpose.msra.mxu0 0.0
        %1002 = vmatprep.subr.mxu0 0.0
        %1003 = vmatpush1.xpose.msra.mxu0 0.0
        %1004 = vmatprep.subr.mxu0 0.0
        %1005 = vmatpush1.xpose.msra.mxu0 0.0
        %1006 = vmatprep.mubr.f32.mxu0 0.0
        %1007 = vmatmul.mubr.f32.gmra.mrb[0].mxu0 %v937
        %v1008 = vpop.f32.mrb[0].mxu0
        %v1009 = vadd.f32 0.0, %v1008
        %v1010 = vpop.f32.mrb[0].mxu0
        %1011 = vdwg.mxu0
        %v1012 = vsel %vm935, %v1009, -inf
        %1013 = vmax.xlane.f32.xlu0 %v1012
        %v1014 = vpop.xlane.xlu0 %1013
        %v1015 = vsub.f32 %v1009, %v1014
        %v1016 = vmul.f32 %v1015, 1.442695
        %v1017 = vpow.pop %v1016
        %v1018 = vsel %vm935, %v1017, 0.0
        %1019 = vadd.xlane.f32.xlu0 %v1018
        %v1020 = vpop.xlane.xlu0 %1019
        %v1021 = vrcp.pop %v1020
        %v1022 = vmul.f32 %v1017, %v1021
        %1023 = vrot.lane.b32.xlu0 %v931, 96
        %v1024 = vpop.permute.xlu0 %1023
        %v1027 = vsel %vm935, %v1022, 0
        %1029 = vmatprep.subr.mxu0 0.0
        %1030 = vmatpush1.msra.mxu0 %v1024
        %1031 = vmatprep.subr.mxu0 0.0
        %1032 = vmatpush1.msra.mxu0 0.0
        %1033 = vmatprep.subr.mxu0 0.0
        %1034 = vmatpush1.msra.mxu0 0.0
        %1035 = vmatprep.subr.mxu0 0.0
        %1036 = vmatpush1.msra.mxu0 0.0
        %1037 = vmatprep.subr.mxu0 0.0
        %1038 = vmatpush1.msra.mxu0 0.0
        %1039 = vmatprep.subr.mxu0 0.0
        %1040 = vmatpush1.msra.mxu0 0.0
        %1041 = vmatprep.subr.mxu0 0.0
        %1042 = vmatpush1.msra.mxu0 0.0
        %1043 = vmatprep.subr.mxu0 0.0
        %1044 = vmatpush1.msra.mxu0 0.0
        %1045 = vmatprep.subr.mxu0 0.0
        %1046 = vmatpush1.msra.mxu0 0.0
        %1047 = vmatprep.subr.mxu0 0.0
        %1048 = vmatpush1.msra.mxu0 0.0
        %1049 = vmatprep.subr.mxu0 0.0
        %1050 = vmatpush1.msra.mxu0 0.0
        %1051 = vmatprep.subr.mxu0 0.0
        %1052 = vmatpush1.msra.mxu0 0.0
        %1053 = vmatprep.subr.mxu0 0.0
        %1054 = vmatpush1.msra.mxu0 0.0
        %1055 = vmatprep.subr.mxu0 0.0
        %1056 = vmatpush1.msra.mxu0 0.0
        %1057 = vmatprep.subr.mxu0 0.0
        %1058 = vmatpush1.msra.mxu0 0.0
        %1059 = vmatprep.subr.mxu0 0.0
        %1060 = vmatpush1.msra.mxu0 0.0
        %1061 = vmatprep.subr.mxu0 0.0
        %1062 = vmatpush1.msra.mxu0 0.0
        %1063 = vmatprep.subr.mxu0 0.0
        %1064 = vmatpush1.msra.mxu0 0.0
        %1065 = vmatprep.subr.mxu0 0.0
        %1066 = vmatpush1.msra.mxu0 0.0
        %1067 = vmatprep.subr.mxu0 0.0
        %1068 = vmatpush1.msra.mxu0 0.0
        %1069 = vmatprep.subr.mxu0 0.0
        %1070 = vmatpush1.msra.mxu0 0.0
        %1071 = vmatprep.subr.mxu0 0.0
        %1072 = vmatpush1.msra.mxu0 0.0
        %1073 = vmatprep.subr.mxu0 0.0
        %1074 = vmatpush1.msra.mxu0 0.0
        %1075 = vmatprep.subr.mxu0 0.0
        %1076 = vmatpush1.msra.mxu0 0.0
        %1077 = vmatprep.subr.mxu0 0.0
        %1078 = vmatpush1.msra.mxu0 0.0
        %1079 = vmatprep.subr.mxu0 0.0
        %1080 = vmatpush1.msra.mxu0 0.0
        %1081 = vmatprep.subr.mxu0 0.0
        %1082 = vmatpush1.msra.mxu0 0.0
        %1083 = vmatprep.subr.mxu0 0.0
        %1084 = vmatpush1.msra.mxu0 0.0
        %1085 = vmatprep.subr.mxu0 0.0
        %1086 = vmatpush1.msra.mxu0 0.0
        %1087 = vmatprep.subr.mxu0 0.0
        %1088 = vmatpush1.msra.mxu0 0.0
        %1089 = vmatprep.subr.mxu0 0.0
        %1090 = vmatpush1.msra.mxu0 0.0
        %1091 = vmatprep.subr.mxu0 0.0
        %1092 = vmatpush1.msra.mxu0 0.0
        %1093 = vmatprep.mubr.f32.mxu0 0.0
        %1094 = vmatmul.mubr.f32.gmra.mrb[0].mxu0 %v1027
        %v1095 = vpop.f32.mrb[0].mxu0
        %v1096 = vadd.f32 0.0, %v1095
        %v1097 = vpop.f32.mrb[0].mxu0
        %1098 = vdwg.mxu0
        %1099 = vrot.lane.b32.xlu0 %v934, 120
        %v1100 = vpop.permute.xlu0 %1099
        %1101 = vrot.lane.b32.xlu0 %v931, 120
        %v1102 = vpop.permute.xlu0 %1101
        %v1103 = vsel %vm935, %v1100, 0
        %v1105 = vsel %vm935, %v1102, 0
        %1107 = vmatprep.subr.mxu0 0.0
        %1108 = vmatpush1.xpose.msra.mxu0 %v1105
        %1109 = vmatprep.subr.mxu0 0.0
        %1110 = vmatpush1.xpose.msra.mxu0 0.0
        %1111 = vmatprep.subr.mxu0 0.0
        %1112 = vmatpush1.xpose.msra.mxu0 0.0
        %1113 = vmatprep.subr.mxu0 0.0
        %1114 = vmatpush1.xpose.msra.mxu0 0.0
        %1115 = vmatprep.subr.mxu0 0.0
        %1116 = vmatpush1.xpose.msra.mxu0 0.0
        %1117 = vmatprep.subr.mxu0 0.0
        %1118 = vmatpush1.xpose.msra.mxu0 0.0
        %1119 = vmatprep.subr.mxu0 0.0
        %1120 = vmatpush1.xpose.msra.mxu0 0.0
        %1121 = vmatprep.subr.mxu0 0.0
        %1122 = vmatpush1.xpose.msra.mxu0 0.0
        %1123 = vmatprep.subr.mxu0 0.0
        %1124 = vmatpush1.xpose.msra.mxu0 0.0
        %1125 = vmatprep.subr.mxu0 0.0
        %1126 = vmatpush1.xpose.msra.mxu0 0.0
        %1127 = vmatprep.subr.mxu0 0.0
        %1128 = vmatpush1.xpose.msra.mxu0 0.0
        %1129 = vmatprep.subr.mxu0 0.0
        %1130 = vmatpush1.xpose.msra.mxu0 0.0
        %1131 = vmatprep.subr.mxu0 0.0
        %1132 = vmatpush1.xpose.msra.mxu0 0.0
        %1133 = vmatprep.subr.mxu0 0.0
        %1134 = vmatpush1.xpose.msra.mxu0 0.0
        %1135 = vmatprep.subr.mxu0 0.0
        %1136 = vmatpush1.xpose.msra.mxu0 0.0
        %1137 = vmatprep.subr.mxu0 0.0
        %1138 = vmatpush1.xpose.msra.mxu0 0.0
        %1139 = vmatprep.subr.mxu0 0.0
        %1140 = vmatpush1.xpose.msra.mxu0 0.0
        %1141 = vmatprep.subr.mxu0 0.0
        %1142 = vmatpush1.xpose.msra.mxu0 0.0
        %1143 = vmatprep.subr.mxu0 0.0
        %1144 = vmatpush1.xpose.msra.mxu0 0.0
        %1145 = vmatprep.subr.mxu0 0.0
        %1146 = vmatpush1.xpose.msra.mxu0 0.0
        %1147 = vmatprep.subr.mxu0 0.0
        %1148 = vmatpush1.xpose.msra.mxu0 0.0
        %1149 = vmatprep.subr.mxu0 0.0
        %1150 = vmatpush1.xpose.msra.mxu0 0.0
        %1151 = vmatprep.subr.mxu0 0.0
        %1152 = vmatpush1.xpose.msra.mxu0 0.0
        %1153 = vmatprep.subr.mxu0 0.0
        %1154 = vmatpush1.xpose.msra.mxu0 0.0
        %1155 = vmatprep.subr.mxu0 0.0
        %1156 = vmatpush1.xpose.msra.mxu0 0.0
        %1157 = vmatprep.subr.mxu0 0.0
        %1158 = vmatpush1.xpose.msra.mxu0 0.0
        %1159 = vmatprep.subr.mxu0 0.0
        %1160 = vmatpush1.xpose.msra.mxu0 0.0
        %1161 = vmatprep.subr.mxu0 0.0
        %1162 = vmatpush1.xpose.msra.mxu0 0.0
        %1163 = vmatprep.subr.mxu0 0.0
        %1164 = vmatpush1.xpose.msra.mxu0 0.0
        %1165 = vmatprep.subr.mxu0 0.0
        %1166 = vmatpush1.xpose.msra.mxu0 0.0
        %1167 = vmatprep.subr.mxu0 0.0
        %1168 = vmatpush1.xpose.msra.mxu0 0.0
        %1169 = vmatprep.subr.mxu0 0.0
        %1170 = vmatpush1.xpose.msra.mxu0 0.0
        %1171 = vmatprep.mubr.f32.mxu0 0.0
        %1172 = vmatmul.mubr.f32.gmra.mrb[0].mxu0 %v1103
        %v1173 = vpop.f32.mrb[0].mxu0
        %v1174 = vadd.f32 0.0, %v1173
        %v1175 = vpop.f32.mrb[0].mxu0
        %1176 = vdwg.mxu0
        %v1177 = vsel %vm935, %v1174, -inf
        %1178 = vmax.xlane.f32.xlu0 %v1177
        %v1179 = vpop.xlane.xlu0 %1178
        %v1180 = vsub.f32 %v1174, %v1179
        %v1181 = vmul.f32 %v1180, 1.442695
        %v1182 = vpow.pop %v1181
        %v1183 = vsel %vm935, %v1182, 0.0
        %1184 = vadd.xlane.f32.xlu0 %v1183
        %v1185 = vpop.xlane.xlu0 %1184
        %v1186 = vrcp.pop %v1185
        %v1187 = vmul.f32 %v1182, %v1186
        %1188 = vrot.lane.b32.xlu0 %v931, 88
        %v1189 = vpop.permute.xlu0 %1188
        %v1192 = vsel %vm935, %v1187, 0
        %1194 = vmatprep.subr.mxu0 0.0
        %1195 = vmatpush1.msra.mxu0 %v1189
        %1196 = vmatprep.subr.mxu0 0.0
        %1197 = vmatpush1.msra.mxu0 0.0
        %1198 = vmatprep.subr.mxu0 0.0
        %1199 = vmatpush1.msra.mxu0 0.0
        %1200 = vmatprep.subr.mxu0 0.0
        %1201 = vmatpush1.msra.mxu0 0.0
        %1202 = vmatprep.subr.mxu0 0.0
        %1203 = vmatpush1.msra.mxu0 0.0
        %1204 = vmatprep.subr.mxu0 0.0
        %1205 = vmatpush1.msra.mxu0 0.0
        %1206 = vmatprep.subr.mxu0 0.0
        %1207 = vmatpush1.msra.mxu0 0.0
        %1208 = vmatprep.subr.mxu0 0.0
        %1209 = vmatpush1.msra.mxu0 0.0
        %1210 = vmatprep.subr.mxu0 0.0
        %1211 = vmatpush1.msra.mxu0 0.0
        %1212 = vmatprep.subr.mxu0 0.0
        %1213 = vmatpush1.msra.mxu0 0.0
        %1214 = vmatprep.subr.mxu0 0.0
        %1215 = vmatpush1.msra.mxu0 0.0
        %1216 = vmatprep.subr.mxu0 0.0
        %1217 = vmatpush1.msra.mxu0 0.0
        %1218 = vmatprep.subr.mxu0 0.0
        %1219 = vmatpush1.msra.mxu0 0.0
        %1220 = vmatprep.subr.mxu0 0.0
        %1221 = vmatpush1.msra.mxu0 0.0
        %1222 = vmatprep.subr.mxu0 0.0
        %1223 = vmatpush1.msra.mxu0 0.0
        %1224 = vmatprep.subr.mxu0 0.0
        %1225 = vmatpush1.msra.mxu0 0.0
        %1226 = vmatprep.subr.mxu0 0.0
        %1227 = vmatpush1.msra.mxu0 0.0
        %1228 = vmatprep.subr.mxu0 0.0
        %1229 = vmatpush1.msra.mxu0 0.0
        %1230 = vmatprep.subr.mxu0 0.0
        %1231 = vmatpush1.msra.mxu0 0.0
        %1232 = vmatprep.subr.mxu0 0.0
        %1233 = vmatpush1.msra.mxu0 0.0
        %1234 = vmatprep.subr.mxu0 0.0
        %1235 = vmatpush1.msra.mxu0 0.0
        %1236 = vmatprep.subr.mxu0 0.0
        %1237 = vmatpush1.msra.mxu0 0.0
        %1238 = vmatprep.subr.mxu0 0.0
        %1239 = vmatpush1.msra.mxu0 0.0
        %1240 = vmatprep.subr.mxu0 0.0
        %1241 = vmatpush1.msra.mxu0 0.0
        %1242 = vmatprep.subr.mxu0 0.0
        %1243 = vmatpush1.msra.mxu0 0.0
        %1244 = vmatprep.subr.mxu0 0.0
        %1245 = vmatpush1.msra.mxu0 0.0
        %1246 = vmatprep.subr.mxu0 0.0
        %1247 = vmatpush1.msra.mxu0 0.0
        %1248 = vmatprep.subr.mxu0 0.0
        %1249 = vmatpush1.msra.mxu0 0.0
        %1250 = vmatprep.subr.mxu0 0.0
        %1251 = vmatpush1.msra.mxu0 0.0
        %1252 = vmatprep.subr.mxu0 0.0
        %1253 = vmatpush1.msra.mxu0 0.0
        %1254 = vmatprep.subr.mxu0 0.0
        %1255 = vmatpush1.msra.mxu0 0.0
        %1256 = vmatprep.subr.mxu0 0.0
        %1257 = vmatpush1.msra.mxu0 0.0
        %1258 = vmatprep.mubr.f32.mxu0 0.0
        %1259 = vmatmul.mubr.f32.gmra.mrb[0].mxu0 %v1192
        %v1260 = vpop.f32.mrb[0].mxu0
        %v1261 = vadd.f32 0.0, %v1260
        %v1262 = vpop.f32.mrb[0].mxu0
        %1263 = vdwg.mxu0
        %1264 = vrot.lane.b32.xlu0 %v934, 112
        %v1265 = vpop.permute.xlu0 %1264
        %1266 = vrot.lane.b32.xlu0 %v931, 112
        %v1267 = vpop.permute.xlu0 %1266
        %v1268 = vsel %vm935, %v1265, 0
        %v1270 = vsel %vm935, %v1267, 0
        %1272 = vmatprep.subr.mxu0 0.0
        %1273 = vmatpush1.xpose.msra.mxu0 %v1270
        %1274 = vmatprep.subr.mxu0 0.0
        %1275 = vmatpush1.xpose.msra.mxu0 0.0
        %1276 = vmatprep.subr.mxu0 0.0
        %1277 = vmatpush1.xpose.msra.mxu0 0.0
        %1278 = vmatprep.subr.mxu0 0.0
        %1279 = vmatpush1.xpose.msra.mxu0 0.0
        %1280 = vmatprep.subr.mxu0 0.0
        %1281 = vmatpush1.xpose.msra.mxu0 0.0
        %1282 = vmatprep.subr.mxu0 0.0
        %1283 = vmatpush1.xpose.msra.mxu0 0.0
        %1284 = vmatprep.subr.mxu0 0.0
        %1285 = vmatpush1.xpose.msra.mxu0 0.0
        %1286 = vmatprep.subr.mxu0 0.0
        %1287 = vmatpush1.xpose.msra.mxu0 0.0
        %1288 = vmatprep.subr.mxu0 0.0
        %1289 = vmatpush1.xpose.msra.mxu0 0.0
        %1290 = vmatprep.subr.mxu0 0.0
        %1291 = vmatpush1.xpose.msra.mxu0 0.0
        %1292 = vmatprep.subr.mxu0 0.0
        %1293 = vmatpush1.xpose.msra.mxu0 0.0
        %1294 = vmatprep.subr.mxu0 0.0
        %1295 = vmatpush1.xpose.msra.mxu0 0.0
        %1296 = vmatprep.subr.mxu0 0.0
        %1297 = vmatpush1.xpose.msra.mxu0 0.0
        %1298 = vmatprep.subr.mxu0 0.0
        %1299 = vmatpush1.xpose.msra.mxu0 0.0
        %1300 = vmatprep.subr.mxu0 0.0
        %1301 = vmatpush1.xpose.msra.mxu0 0.0
        %1302 = vmatprep.subr.mxu0 0.0
        %1303 = vmatpush1.xpose.msra.mxu0 0.0
        %1304 = vmatprep.subr.mxu0 0.0
        %1305 = vmatpush1.xpose.msra.mxu0 0.0
        %1306 = vmatprep.subr.mxu0 0.0
        %1307 = vmatpush1.xpose.msra.mxu0 0.0
        %1308 = vmatprep.subr.mxu0 0.0
        %1309 = vmatpush1.xpose.msra.mxu0 0.0
        %1310 = vmatprep.subr.mxu0 0.0
        %1311 = vmatpush1.xpose.msra.mxu0 0.0
        %1312 = vmatprep.subr.mxu0 0.0
        %1313 = vmatpush1.xpose.msra.mxu0 0.0
        %1314 = vmatprep.subr.mxu0 0.0
        %1315 = vmatpush1.xpose.msra.mxu0 0.0
        %1316 = vmatprep.subr.mxu0 0.0
        %1317 = vmatpush1.xpose.msra.mxu0 0.0
        %1318 = vmatprep.subr.mxu0 0.0
        %1319 = vmatpush1.xpose.msra.mxu0 0.0
        %1320 = vmatprep.subr.mxu0 0.0
        %1321 = vmatpush1.xpose.msra.mxu0 0.0
        %1322 = vmatprep.subr.mxu0 0.0
        %1323 = vmatpush1.xpose.msra.mxu0 0.0
        %1324 = vmatprep.subr.mxu0 0.0
        %1325 = vmatpush1.xpose.msra.mxu0 0.0
        %1326 = vmatprep.subr.mxu0 0.0
        %1327 = vmatpush1.xpose.msra.mxu0 0.0
        %1328 = vmatprep.subr.mxu0 0.0
        %1329 = vmatpush1.xpose.msra.mxu0 0.0
        %1330 = vmatprep.subr.mxu0 0.0
        %1331 = vmatpush1.xpose.msra.mxu0 0.0
        %1332 = vmatprep.subr.mxu0 0.0
        %1333 = vmatpush1.xpose.msra.mxu0 0.0
        %1334 = vmatprep.subr.mxu0 0.0
        %1335 = vmatpush1.xpose.msra.mxu0 0.0
        %1336 = vmatprep.mubr.f32.mxu0 0.0
        %1337 = vmatmul.mubr.f32.gmra.mrb[0].mxu0 %v1268
        %v1338 = vpop.f32.mrb[0].mxu0
        %v1339 = vadd.f32 0.0, %v1338
        %v1340 = vpop.f32.mrb[0].mxu0
        %1341 = vdwg.mxu0
        %v1342 = vsel %vm935, %v1339, -inf
        %1343 = vmax.xlane.f32.xlu0 %v1342
        %v1344 = vpop.xlane.xlu0 %1343
        %v1345 = vsub.f32 %v1339, %v1344
        %v1346 = vmul.f32 %v1345, 1.442695
        %v1347 = vpow.pop %v1346
        %v1348 = vsel %vm935, %v1347, 0.0
        %1349 = vadd.xlane.f32.xlu0 %v1348
        %v1350 = vpop.xlane.xlu0 %1349
        %v1351 = vrcp.pop %v1350
        %v1352 = vmul.f32 %v1347, %v1351
        %1353 = vrot.lane.b32.xlu0 %v931, 80
        %v1354 = vpop.permute.xlu0 %1353
        %v1357 = vsel %vm935, %v1352, 0
        %1359 = vmatprep.subr.mxu0 0.0
        %1360 = vmatpush1.msra.mxu0 %v1354
        %1361 = vmatprep.subr.mxu0 0.0
        %1362 = vmatpush1.msra.mxu0 0.0
        %1363 = vmatprep.subr.mxu0 0.0
        %1364 = vmatpush1.msra.mxu0 0.0
        %1365 = vmatprep.subr.mxu0 0.0
        %1366 = vmatpush1.msra.mxu0 0.0
        %1367 = vmatprep.subr.mxu0 0.0
        %1368 = vmatpush1.msra.mxu0 0.0
        %1369 = vmatprep.subr.mxu0 0.0
        %1370 = vmatpush1.msra.mxu0 0.0
        %1371 = vmatprep.subr.mxu0 0.0
        %1372 = vmatpush1.msra.mxu0 0.0
        %1373 = vmatprep.subr.mxu0 0.0
        %1374 = vmatpush1.msra.mxu0 0.0
        %1375 = vmatprep.subr.mxu0 0.0
        %1376 = vmatpush1.msra.mxu0 0.0
        %1377 = vmatprep.subr.mxu0 0.0
        %1378 = vmatpush1.msra.mxu0 0.0
        %1379 = vmatprep.subr.mxu0 0.0
        %1380 = vmatpush1.msra.mxu0 0.0
        %1381 = vmatprep.subr.mxu0 0.0
        %1382 = vmatpush1.msra.mxu0 0.0
        %1383 = vmatprep.subr.mxu0 0.0
        %1384 = vmatpush1.msra.mxu0 0.0
        %1385 = vmatprep.subr.mxu0 0.0
        %1386 = vmatpush1.msra.mxu0 0.0
        %1387 = vmatprep.subr.mxu0 0.0
        %1388 = vmatpush1.msra.mxu0 0.0
        %1389 = vmatprep.subr.mxu0 0.0
        %1390 = vmatpush1.msra.mxu0 0.0
        %1391 = vmatprep.subr.mxu0 0.0
        %1392 = vmatpush1.msra.mxu0 0.0
        %1393 = vmatprep.subr.mxu0 0.0
        %1394 = vmatpush1.msra.mxu0 0.0
        %1395 = vmatprep.subr.mxu0 0.0
        %1396 = vmatpush1.msra.mxu0 0.0
        %1397 = vmatprep.subr.mxu0 0.0
        %1398 = vmatpush1.msra.mxu0 0.0
        %1399 = vmatprep.subr.mxu0 0.0
        %1400 = vmatpush1.msra.mxu0 0.0
        %1401 = vmatprep.subr.mxu0 0.0
        %1402 = vmatpush1.msra.mxu0 0.0
        %1403 = vmatprep.subr.mxu0 0.0
        %1404 = vmatpush1.msra.mxu0 0.0
        %1405 = vmatprep.subr.mxu0 0.0
        %1406 = vmatpush1.msra.mxu0 0.0
        %1407 = vmatprep.subr.mxu0 0.0
        %1408 = vmatpush1.msra.mxu0 0.0
        %1409 = vmatprep.subr.mxu0 0.0
        %1410 = vmatpush1.msra.mxu0 0.0
        %1411 = vmatprep.subr.mxu0 0.0
        %1412 = vmatpush1.msra.mxu0 0.0
        %1413 = vmatprep.subr.mxu0 0.0
        %1414 = vmatpush1.msra.mxu0 0.0
        %1415 = vmatprep.subr.mxu0 0.0
        %1416 = vmatpush1.msra.mxu0 0.0
        %1417 = vmatprep.subr.mxu0 0.0
        %1418 = vmatpush1.msra.mxu0 0.0
        %1419 = vmatprep.subr.mxu0 0.0
        %1420 = vmatpush1.msra.mxu0 0.0
        %1421 = vmatprep.subr.mxu0 0.0
        %1422 = vmatpush1.msra.mxu0 0.0
        %1423 = vmatprep.mubr.f32.mxu0 0.0
        %1424 = vmatmul.mubr.f32.gmra.mrb[0].mxu0 %v1357
        %v1425 = vpop.f32.mrb[0].mxu0
        %v1426 = vadd.f32 0.0, %v1425
        %v1427 = vpop.f32.mrb[0].mxu0
        %1428 = vdwg.mxu0
        %1429 = vrot.lane.b32.xlu0 %v934, 104
        %v1430 = vpop.permute.xlu0 %1429
        %1431 = vrot.lane.b32.xlu0 %v931, 104
        %v1432 = vpop.permute.xlu0 %1431
        %v1433 = vsel %vm935, %v1430, 0
        %v1435 = vsel %vm935, %v1432, 0
        %1437 = vmatprep.subr.mxu0 0.0
        %1438 = vmatpush1.xpose.msra.mxu0 %v1435
        %1439 = vmatprep.subr.mxu0 0.0
        %1440 = vmatpush1.xpose.msra.mxu0 0.0
        %1441 = vmatprep.subr.mxu0 0.0
        %1442 = vmatpush1.xpose.msra.mxu0 0.0
        %1443 = vmatprep.subr.mxu0 0.0
        %1444 = vmatpush1.xpose.msra.mxu0 0.0
        %1445 = vmatprep.subr.mxu0 0.0
        %1446 = vmatpush1.xpose.msra.mxu0 0.0
        %1447 = vmatprep.subr.mxu0 0.0
        %1448 = vmatpush1.xpose.msra.mxu0 0.0
        %1449 = vmatprep.subr.mxu0 0.0
        %1450 = vmatpush1.xpose.msra.mxu0 0.0
        %1451 = vmatprep.subr.mxu0 0.0
        %1452 = vmatpush1.xpose.msra.mxu0 0.0
        %1453 = vmatprep.subr.mxu0 0.0
        %1454 = vmatpush1.xpose.msra.mxu0 0.0
        %1455 = vmatprep.subr.mxu0 0.0
        %1456 = vmatpush1.xpose.msra.mxu0 0.0
        %1457 = vmatprep.subr.mxu0 0.0
        %1458 = vmatpush1.xpose.msra.mxu0 0.0
        %1459 = vmatprep.subr.mxu0 0.0
        %1460 = vmatpush1.xpose.msra.mxu0 0.0
        %1461 = vmatprep.subr.mxu0 0.0
        %1462 = vmatpush1.xpose.msra.mxu0 0.0
        %1463 = vmatprep.subr.mxu0 0.0
        %1464 = vmatpush1.xpose.msra.mxu0 0.0
        %1465 = vmatprep.subr.mxu0 0.0
        %1466 = vmatpush1.xpose.msra.mxu0 0.0
        %1467 = vmatprep.subr.mxu0 0.0
        %1468 = vmatpush1.xpose.msra.mxu0 0.0
        %1469 = vmatprep.subr.mxu0 0.0
        %1470 = vmatpush1.xpose.msra.mxu0 0.0
        %1471 = vmatprep.subr.mxu0 0.0
        %1472 = vmatpush1.xpose.msra.mxu0 0.0
        %1473 = vmatprep.subr.mxu0 0.0
        %1474 = vmatpush1.xpose.msra.mxu0 0.0
        %1475 = vmatprep.subr.mxu0 0.0
        %1476 = vmatpush1.xpose.msra.mxu0 0.0
        %1477 = vmatprep.subr.mxu0 0.0
        %1478 = vmatpush1.xpose.msra.mxu0 0.0
        %1479 = vmatprep.subr.mxu0 0.0
        %1480 = vmatpush1.xpose.msra.mxu0 0.0
        %1481 = vmatprep.subr.mxu0 0.0
        %1482 = vmatpush1.xpose.msra.mxu0 0.0
        %1483 = vmatprep.subr.mxu0 0.0
        %1484 = vmatpush1.xpose.msra.mxu0 0.0
        %1485 = vmatprep.subr.mxu0 0.0
        %1486 = vmatpush1.xpose.msra.mxu0 0.0
        %1487 = vmatprep.subr.mxu0 0.0
        %1488 = vmatpush1.xpose.msra.mxu0 0.0
        %1489 = vmatprep.subr.mxu0 0.0
        %1490 = vmatpush1.xpose.msra.mxu0 0.0
        %1491 = vmatprep.subr.mxu0 0.0
        %1492 = vmatpush1.xpose.msra.mxu0 0.0
        %1493 = vmatprep.subr.mxu0 0.0
        %1494 = vmatpush1.xpose.msra.mxu0 0.0
        %1495 = vmatprep.subr.mxu0 0.0
        %1496 = vmatpush1.xpose.msra.mxu0 0.0
        %1497 = vmatprep.subr.mxu0 0.0
        %1498 = vmatpush1.xpose.msra.mxu0 0.0
        %1499 = vmatprep.subr.mxu0 0.0
        %1500 = vmatpush1.xpose.msra.mxu0 0.0
        %1501 = vmatprep.mubr.f32.mxu0 0.0
        %1502 = vmatmul.mubr.f32.gmra.mrb[0].mxu0 %v1433
        %v1503 = vpop.f32.mrb[0].mxu0
        %v1504 = vadd.f32 0.0, %v1503
        %v1505 = vpop.f32.mrb[0].mxu0
        %1506 = vdwg.mxu0
        %v1507 = vsel %vm935, %v1504, -inf
        %1508 = vmax.xlane.f32.xlu0 %v1507
        %v1509 = vpop.xlane.xlu0 %1508
        %v1510 = vsub.f32 %v1504, %v1509
        %v1511 = vmul.f32 %v1510, 1.442695
        %v1512 = vpow.pop %v1511
        %v1513 = vsel %vm935, %v1512, 0.0
        %1514 = vadd.xlane.f32.xlu0 %v1513
        %v1515 = vpop.xlane.xlu0 %1514
        %v1516 = vrcp.pop %v1515
        %v1517 = vmul.f32 %v1512, %v1516
        %1518 = vrot.lane.b32.xlu0 %v931, 72
        %v1519 = vpop.permute.xlu0 %1518
        %v1522 = vsel %vm935, %v1517, 0
        %1524 = vmatprep.subr.mxu0 0.0
        %1525 = vmatpush1.msra.mxu0 %v1519
        %1526 = vmatprep.subr.mxu0 0.0
        %1527 = vmatpush1.msra.mxu0 0.0
        %1528 = vmatprep.subr.mxu0 0.0
        %1529 = vmatpush1.msra.mxu0 0.0
        %1530 = vmatprep.subr.mxu0 0.0
        %1531 = vmatpush1.msra.mxu0 0.0
        %1532 = vmatprep.subr.mxu0 0.0
        %1533 = vmatpush1.msra.mxu0 0.0
        %1534 = vmatprep.subr.mxu0 0.0
        %1535 = vmatpush1.msra.mxu0 0.0
        %1536 = vmatprep.subr.mxu0 0.0
        %1537 = vmatpush1.msra.mxu0 0.0
        %1538 = vmatprep.subr.mxu0 0.0
        %1539 = vmatpush1.msra.mxu0 0.0
        %1540 = vmatprep.subr.mxu0 0.0
        %1541 = vmatpush1.msra.mxu0 0.0
        %1542 = vmatprep.subr.mxu0 0.0
        %1543 = vmatpush1.msra.mxu0 0.0
        %1544 = vmatprep.subr.mxu0 0.0
        %1545 = vmatpush1.msra.mxu0 0.0
        %1546 = vmatprep.subr.mxu0 0.0
        %1547 = vmatpush1.msra.mxu0 0.0
        %1548 = vmatprep.subr.mxu0 0.0
        %1549 = vmatpush1.msra.mxu0 0.0
        %1550 = vmatprep.subr.mxu0 0.0
        %1551 = vmatpush1.msra.mxu0 0.0
        %1552 = vmatprep.subr.mxu0 0.0
        %1553 = vmatpush1.msra.mxu0 0.0
        %1554 = vmatprep.subr.mxu0 0.0
        %1555 = vmatpush1.msra.mxu0 0.0
        %1556 = vmatprep.subr.mxu0 0.0
        %1557 = vmatpush1.msra.mxu0 0.0
        %1558 = vmatprep.subr.mxu0 0.0
        %1559 = vmatpush1.msra.mxu0 0.0
        %1560 = vmatprep.subr.mxu0 0.0
        %1561 = vmatpush1.msra.mxu0 0.0
        %1562 = vmatprep.subr.mxu0 0.0
        %1563 = vmatpush1.msra.mxu0 0.0
        %1564 = vmatprep.subr.mxu0 0.0
        %1565 = vmatpush1.msra.mxu0 0.0
        %1566 = vmatprep.subr.mxu0 0.0
        %1567 = vmatpush1.msra.mxu0 0.0
        %1568 = vmatprep.subr.mxu0 0.0
        %1569 = vmatpush1.msra.mxu0 0.0
        %1570 = vmatprep.subr.mxu0 0.0
        %1571 = vmatpush1.msra.mxu0 0.0
        %1572 = vmatprep.subr.mxu0 0.0
        %1573 = vmatpush1.msra.mxu0 0.0
        %1574 = vmatprep.subr.mxu0 0.0
        %1575 = vmatpush1.msra.mxu0 0.0
        %1576 = vmatprep.subr.mxu0 0.0
        %1577 = vmatpush1.msra.mxu0 0.0
        %1578 = vmatprep.subr.mxu0 0.0
        %1579 = vmatpush1.msra.mxu0 0.0
        %1580 = vmatprep.subr.mxu0 0.0
        %1581 = vmatpush1.msra.mxu0 0.0
        %1582 = vmatprep.subr.mxu0 0.0
        %1583 = vmatpush1.msra.mxu0 0.0
        %1584 = vmatprep.subr.mxu0 0.0
        %1585 = vmatpush1.msra.mxu0 0.0
        %1586 = vmatprep.subr.mxu0 0.0
        %1587 = vmatpush1.msra.mxu0 0.0
        %1588 = vmatprep.mubr.f32.mxu0 0.0
        %1589 = vmatmul.mubr.f32.gmra.mrb[0].mxu0 %v1522
        %v1590 = vpop.f32.mrb[0].mxu0
        %v1591 = vadd.f32 0.0, %v1590
        %v1592 = vpop.f32.mrb[0].mxu0
        %1593 = vdwg.mxu0
        %1595 = vrot.lane.b32.xlu0 %v1261, 8
        %v1596 = vpop.permute.xlu0 %1595
        %1599 = vrot.lane.b32.xlu0 %v1426, 16
        %v1600 = vpop.permute.xlu0 %1599
        %1603 = vrot.lane.b32.xlu0 %v1591, 24
        %v1604 = vpop.permute.xlu0 %1603
        %v1606 = vsel %vm935, %v1096, %v1596
        %vm1607 = vcmask 130048
        %v1608 = vsel %vm1607, %v1606, %v1600
        %v1609 = vsel %vm738, %v1608, %v1604
        %v1610 = vld [vmem:[%s10] sm:$0xff]
        %v1611 = vld [vmem:[%s10 + $0x8] sm:$0xff]
        %v1612 = vld [vmem:[%s10 + $0x10] sm:$0xff]
        %v1613 = vld [vmem:[%s10 + $0x18] sm:$0xff]
        %v1614 = vld [vmem:[%s11] sm:$0x1]
        %v1616 = vlaneseq
        %v1617 = vshrl.u32 %v1616, 7
        %v1618 = vsub.s32 0, %v1617
        %v1619 = vrot.slane %v1614, %v1618
        %v1622 = vsel %vm706, %v1609, 0
        %1624 = vmatprep.subr.mxu0 0.0
        %1625 = vmatpush1.msra.mxu0 %v1610
        %1626 = vmatprep.subr.mxu0 0.0
        %1627 = vmatpush1.msra.mxu0 %v1611
        %1628 = vmatprep.subr.mxu0 0.0
        %1629 = vmatpush1.msra.mxu0 %v1612
        %1630 = vmatprep.subr.mxu0 0.0
        %1631 = vmatpush1.msra.mxu0 %v1613
        %1632 = vmatprep.subr.mxu0 0.0
        %1633 = vmatpush1.msra.mxu0 0.0
        %1634 = vmatprep.subr.mxu0 0.0
        %1635 = vmatpush1.msra.mxu0 0.0
        %1636 = vmatprep.subr.mxu0 0.0
        %1637 = vmatpush1.msra.mxu0 0.0
        %1638 = vmatprep.subr.mxu0 0.0
        %1639 = vmatpush1.msra.mxu0 0.0
        %1640 = vmatprep.subr.mxu0 0.0
        %1641 = vmatpush1.msra.mxu0 0.0
        %1642 = vmatprep.subr.mxu0 0.0
        %1643 = vmatpush1.msra.mxu0 0.0
        %1644 = vmatprep.subr.mxu0 0.0
        %1645 = vmatpush1.msra.mxu0 0.0
        %1646 = vmatprep.subr.mxu0 0.0
        %1647 = vmatpush1.msra.mxu0 0.0
        %1648 = vmatprep.subr.mxu0 0.0
        %1649 = vmatpush1.msra.mxu0 0.0
        %1650 = vmatprep.subr.mxu0 0.0
        %1651 = vmatpush1.msra.mxu0 0.0
        %1652 = vmatprep.subr.mxu0 0.0
        %1653 = vmatpush1.msra.mxu0 0.0
        %1654 = vmatprep.subr.mxu0 0.0
        %1655 = vmatpush1.msra.mxu0 0.0
        %1656 = vmatprep.subr.mxu0 0.0
        %1657 = vmatpush1.msra.mxu0 0.0
        %1658 = vmatprep.subr.mxu0 0.0
        %1659 = vmatpush1.msra.mxu0 0.0
        %1660 = vmatprep.subr.mxu0 0.0
        %1661 = vmatpush1.msra.mxu0 0.0
        %1662 = vmatprep.subr.mxu0 0.0
        %1663 = vmatpush1.msra.mxu0 0.0
        %1664 = vmatprep.subr.mxu0 0.0
        %1665 = vmatpush1.msra.mxu0 0.0
        %1666 = vmatprep.subr.mxu0 0.0
        %1667 = vmatpush1.msra.mxu0 0.0
        %1668 = vmatprep.subr.mxu0 0.0
        %1669 = vmatpush1.msra.mxu0 0.0
        %1670 = vmatprep.subr.mxu0 0.0
        %1671 = vmatpush1.msra.mxu0 0.0
        %1672 = vmatprep.subr.mxu0 0.0
        %1673 = vmatpush1.msra.mxu0 0.0
        %1674 = vmatprep.subr.mxu0 0.0
        %1675 = vmatpush1.msra.mxu0 0.0
        %1676 = vmatprep.subr.mxu0 0.0
        %1677 = vmatpush1.msra.mxu0 0.0
        %1678 = vmatprep.subr.mxu0 0.0
        %1679 = vmatpush1.msra.mxu0 0.0
        %1680 = vmatprep.subr.mxu0 0.0
        %1681 = vmatpush1.msra.mxu0 0.0
        %1682 = vmatprep.subr.mxu0 0.0
        %1683 = vmatpush1.msra.mxu0 0.0
        %1684 = vmatprep.subr.mxu0 0.0
        %1685 = vmatpush1.msra.mxu0 0.0
        %1686 = vmatprep.subr.mxu0 0.0
        %1687 = vmatpush1.msra.mxu0 0.0
        %1688 = vmatprep.mubr.f32.mxu0 0.0
        %1689 = vmatmul.mubr.f32.gmra.mrb[0].mxu0 %v1622
        %v1690 = vpop.f32.mrb[0].mxu0
        %v1691 = vadd.f32 %v1619, %v1690
        %v1692 = vpop.f32.mrb[0].mxu0
        %1693 = vdwg.mxu0
        %v1694 = vadd.f32 %v1691, %v734
        %v1695 = vld [vmem:[#allocation11] sm:$0x1]
        %v1696 = vld [vmem:[#allocation13] sm:$0x1]
        %v1697 = vsel %vm706, %v1694, 0.0
        %1698 = vadd.xlane.f32.xlu0 %v1697
        %v1699 = vpop.xlane.xlu0 %1698
        %v1700 = vmul.f32 %v1699, %v710
        %v1701 = vsub.f32 %v1694, %v1700
        %v1702 = vmul.f32 %v1701, %v1701
        %v1703 = vsel %vm706, %v1702, 0.0
        %1704 = vadd.xlane.f32.xlu0 %v1703
        %v1705 = vpop.xlane.xlu0 %1704
        %v1706 = vmul.f32 %v1705, %v710
        %v1707 = vadd.f32 %v1706, 1e-05
        %v1708 = vrsqrt.pop %v1707
        %v1709 = vmul.f32 %v1701, %v1708
        %v1711 = vlaneseq
        %v1712 = vshrl.u32 %v1711, 7
        %v1713 = vsub.s32 0, %v1712
        %v1714 = vrot.slane %v1695, %v1713
        %v1716 = vmul.f32 %v1709, %v1714
        %v1718 = vlaneseq
        %v1719 = vshrl.u32 %v1718, 7
        %v1720 = vsub.s32 0, %v1719
        %v1721 = vrot.slane %v1696, %v1720
        %v1723 = vadd.f32 %v1716, %v1721
        %v1724 = vld [vmem:[%s14] sm:$0xff]
        %v1725 = vld [vmem:[%s14 + $0x8] sm:$0xff]
        %v1726 = vld [vmem:[%s14 + $0x10] sm:$0xff]
        %v1727 = vld [vmem:[%s14 + $0x18] sm:$0xff]
        %v1728 = vld [vmem:[#allocation14] sm:$0x1]
        %v1730 = vlaneseq
        %v1731 = vshrl.u32 %v1730, 7
        %v1732 = vsub.s32 0, %v1731
        %v1733 = vrot.slane %v1728, %v1732
        %v1736 = vsel %vm706, %v1723, 0
        %1738 = vmatprep.subr.mxu0 0.0
        %1739 = vmatpush1.msra.mxu0 %v1724
        %1740 = vmatprep.subr.mxu0 0.0
        %1741 = vmatpush1.msra.mxu0 %v1725
        %1742 = vmatprep.subr.mxu0 0.0
        %1743 = vmatpush1.msra.mxu0 %v1726
        %1744 = vmatprep.subr.mxu0 0.0
        %1745 = vmatpush1.msra.mxu0 %v1727
        %1746 = vmatprep.subr.mxu0 0.0
        %1747 = vmatpush1.msra.mxu0 0.0
        %1748 = vmatprep.subr.mxu0 0.0
        %1749 = vmatpush1.msra.mxu0 0.0
        %1750 = vmatprep.subr.mxu0 0.0
        %1751 = vmatpush1.msra.mxu0 0.0
        %1752 = vmatprep.subr.mxu0 0.0
        %1753 = vmatpush1.msra.mxu0 0.0
        %1754 = vmatprep.subr.mxu0 0.0
        %1755 = vmatpush1.msra.mxu0 0.0
        %1756 = vmatprep.subr.mxu0 0.0
        %1757 = vmatpush1.msra.mxu0 0.0
        %1758 = vmatprep.subr.mxu0 0.0
        %1759 = vmatpush1.msra.mxu0 0.0
        %1760 = vmatprep.subr.mxu0 0.0
        %1761 = vmatpush1.msra.mxu0 0.0
        %1762 = vmatprep.subr.mxu0 0.0
        %1763 = vmatpush1.msra.mxu0 0.0
        %1764 = vmatprep.subr.mxu0 0.0
        %1765 = vmatpush1.msra.mxu0 0.0
        %1766 = vmatprep.subr.mxu0 0.0
        %1767 = vmatpush1.msra.mxu0 0.0
        %1768 = vmatprep.subr.mxu0 0.0
        %1769 = vmatpush1.msra.mxu0 0.0
        %1770 = vmatprep.subr.mxu0 0.0
        %1771 = vmatpush1.msra.mxu0 0.0
        %1772 = vmatprep.subr.mxu0 0.0
        %1773 = vmatpush1.msra.mxu0 0.0
        %1774 = vmatprep.subr.mxu0 0.0
        %1775 = vmatpush1.msra.mxu0 0.0
        %1776 = vmatprep.subr.mxu0 0.0
        %1777 = vmatpush1.msra.mxu0 0.0
        %1778 = vmatprep.subr.mxu0 0.0
        %1779 = vmatpush1.msra.mxu0 0.0
        %1780 = vmatprep.subr.mxu0 0.0
        %1781 = vmatpush1.msra.mxu0 0.0
        %1782 = vmatprep.subr.mxu0 0.0
        %1783 = vmatpush1.msra.mxu0 0.0
        %1784 = vmatprep.subr.mxu0 0.0
        %1785 = vmatpush1.msra.mxu0 0.0
        %1786 = vmatprep.subr.mxu0 0.0
        %1787 = vmatpush1.msra.mxu0 0.0
        %1788 = vmatprep.subr.mxu0 0.0
        %1789 = vmatpush1.msra.mxu0 0.0
        %1790 = vmatprep.subr.mxu0 0.0
        %1791 = vmatpush1.msra.mxu0 0.0
        %1792 = vmatprep.subr.mxu0 0.0
        %1793 = vmatpush1.msra.mxu0 0.0
        %1794 = vmatprep.subr.mxu0 0.0
        %1795 = vmatpush1.msra.mxu0 0.0
        %1796 = vmatprep.subr.mxu0 0.0
        %1797 = vmatpush1.msra.mxu0 0.0
        %1798 = vmatprep.subr.mxu0 0.0
        %1799 = vmatpush1.msra.mxu0 0.0
        %1800 = vmatprep.subr.mxu0 0.0
        %1801 = vmatpush1.msra.mxu0 0.0
        %1802 = vmatprep.mubr.f32.mxu0 0.0
        %1803 = vmatmul.mubr.f32.gmra.mrb[0].mxu0 %v1736
        %v1804 = vpop.f32.mrb[0].mxu0
        %v1805 = vadd.f32 %v1733, %v1804
        %v1806 = vpop.f32.mrb[0].mxu0
        %1807 = vdwg.mxu0
        %v1808 = vmul.f32 %v1805, 0.5
        %v1809 = vmul.f32 %v1805, 0.70710677
        %v1810 = verf.f32.pop %v1809
        %v1811 = vadd.f32 %v1810, 1.0
        %v1812 = vmul.f32 %v1808, %v1811
        %v1813 = vld [vmem:[%s16] sm:$0xff]
        %v1814 = vld [vmem:[%s16 + $0x8] sm:$0xff]
        %v1815 = vld [vmem:[%s16 + $0x10] sm:$0xff]
        %v1816 = vld [vmem:[%s16 + $0x18] sm:$0xff]
        %v1817 = vld [vmem:[%s16 + $0x20] sm:$0xff]
        %v1818 = vld [vmem:[%s16 + $0x28] sm:$0xff]
        %v1819 = vld [vmem:[%s16 + $0x30] sm:$0xff]
        %v1820 = vld [vmem:[%s16 + $0x38] sm:$0xff]
        %v1821 = vld [vmem:[%s17] sm:$0x1]
        %v1823 = vlaneseq
        %v1824 = vshrl.u32 %v1823, 7
        %v1825 = vsub.s32 0, %v1824
        %v1826 = vrot.slane %v1821, %v1825
        %vm1828 = vcmask 523264
        %v1830 = vsel %vm1828, %v1812, 0
        %1832 = vmatprep.subr.mxu0 0.0
        %1833 = vmatpush1.msra.mxu0 %v1813
        %1834 = vmatprep.subr.mxu0 0.0
        %1835 = vmatpush1.msra.mxu0 %v1814
        %1836 = vmatprep.subr.mxu0 0.0
        %1837 = vmatpush1.msra.mxu0 %v1815
        %1838 = vmatprep.subr.mxu0 0.0
        %1839 = vmatpush1.msra.mxu0 %v1816
        %1840 = vmatprep.subr.mxu0 0.0
        %1841 = vmatpush1.msra.mxu0 %v1817
        %1842 = vmatprep.subr.mxu0 0.0
        %1843 = vmatpush1.msra.mxu0 %v1818
        %1844 = vmatprep.subr.mxu0 0.0
        %1845 = vmatpush1.msra.mxu0 %v1819
        %1846 = vmatprep.subr.mxu0 0.0
        %1847 = vmatpush1.msra.mxu0 %v1820
        %1848 = vmatprep.subr.mxu0 0.0
        %1849 = vmatpush1.msra.mxu0 0.0
        %1850 = vmatprep.subr.mxu0 0.0
        %1851 = vmatpush1.msra.mxu0 0.0
        %1852 = vmatprep.subr.mxu0 0.0
        %1853 = vmatpush1.msra.mxu0 0.0
        %1854 = vmatprep.subr.mxu0 0.0
        %1855 = vmatpush1.msra.mxu0 0.0
        %1856 = vmatprep.subr.mxu0 0.0
        %1857 = vmatpush1.msra.mxu0 0.0
        %1858 = vmatprep.subr.mxu0 0.0
        %1859 = vmatpush1.msra.mxu0 0.0
        %1860 = vmatprep.subr.mxu0 0.0
        %1861 = vmatpush1.msra.mxu0 0.0
        %1862 = vmatprep.subr.mxu0 0.0
        %1863 = vmatpush1.msra.mxu0 0.0
        %1864 = vmatprep.subr.mxu0 0.0
        %1865 = vmatpush1.msra.mxu0 0.0
        %1866 = vmatprep.subr.mxu0 0.0
        %1867 = vmatpush1.msra.mxu0 0.0
        %1868 = vmatprep.subr.mxu0 0.0
        %1869 = vmatpush1.msra.mxu0 0.0
        %1870 = vmatprep.subr.mxu0 0.0
        %1871 = vmatpush1.msra.mxu0 0.0
        %1872 = vmatprep.subr.mxu0 0.0
        %1873 = vmatpush1.msra.mxu0 0.0
        %1874 = vmatprep.subr.mxu0 0.0
        %1875 = vmatpush1.msra.mxu0 0.0
        %1876 = vmatprep.subr.mxu0 0.0
        %1877 = vmatpush1.msra.mxu0 0.0
        %1878 = vmatprep.subr.mxu0 0.0
        %1879 = vmatpush1.msra.mxu0 0.0
        %1880 = vmatprep.subr.mxu0 0.0
        %1881 = vmatpush1.msra.mxu0 0.0
        %1882 = vmatprep.subr.mxu0 0.0
        %1883 = vmatpush1.msra.mxu0 0.0
        %1884 = vmatprep.subr.mxu0 0.0
        %1885 = vmatpush1.msra.mxu0 0.0
        %1886 = vmatprep.subr.mxu0 0.0
        %1887 = vmatpush1.msra.mxu0 0.0
        %1888 = vmatprep.subr.mxu0 0.0
        %1889 = vmatpush1.msra.mxu0 0.0
        %1890 = vmatprep.subr.mxu0 0.0
        %1891 = vmatpush1.msra.mxu0 0.0
        %1892 = vmatprep.subr.mxu0 0.0
        %1893 = vmatpush1.msra.mxu0 0.0
        %1894 = vmatprep.subr.mxu0 0.0
        %1895 = vmatpush1.msra.mxu0 0.0
        %1896 = vmatprep.mubr.f32.mxu0 0.0
        %1897 = vmatmul.mubr.f32.gmra.mrb[0].mxu0 %v1830
        %v1898 = vpop.f32.mrb[0].mxu0
        %v1899 = vadd.f32 %v1826, %v1898
        %v1900 = vpop.f32.mrb[0].mxu0
        %1901 = vdwg.mxu0
        %1902 = vst.msk [vmem:[%s702] sm:$0xff] %vm706, %v1899
        %s1903 = sand.u32 %s437, 1
        %s1904 = scalar_lea.sflag [#allocation4], %s1903
        %s1905 = sand.u32 %s437, 1
        %s1906 = smul.addr %s1905, 8
        %s1907 = scalar_lea.vmem [#allocation16], %s1906
        // Predicated region
        $region125: #{tpu_custom_call.1} parent=91 // pred_check
          %p1908 = pneg %p447
        $region126: #{tpu_custom_call.1} parent=91 // pred_check_branch
          %1910 = sbr.rel (%p1908) target = $region128
        $region127: #{tpu_custom_call.1} parent=91 // pred_region
          %s1912 = ssub.s32 128, 128
          %1913 = vsyncadd %s1904, %s1912
          %s1914 = smul.addr %s41, 128
          %s1915 = scalar_lea.hbm %s18, %s1914
          %s1917 = sshll.u32 %s1907, 4
          %s1918 = int_to_ptr.vmem [resolvable:$true] %s1917
          %1920 = dma.vmem_to_hbm [thread:$0]  %s1918, 128, %s1915, %s1904
        $region128: #{tpu_custom_call.1} parent=91 // pred_fallthru
          _
      $region92: #{tpu_custom_call.1} parent=5 // pred_fallthru
        _
      %p1921 = scmp.le.s32.totalorder 2, %s36
      // Predicated region
      $region129: #{tpu_custom_call.1} parent=5 // pred_check
        %p1922 = pneg %p1921
      $region130: #{tpu_custom_call.1} parent=5 // pred_check_branch
        %1924 = sbr.rel (%p1922) target = $region132
      $region131: #{tpu_custom_call.1} parent=5 // pred_region
        %s1925 = ssub.s32 %s36, 2
        // Predicated region
        $region133: #{tpu_custom_call.1} parent=131 // pred_check
          %p1926 = pneg %p453
        $region134: #{tpu_custom_call.1} parent=131 // pred_check_branch
          %1928 = sbr.rel (%p1926) target = $region136
        $region135: #{tpu_custom_call.1} parent=131 // pred_region
          %s1929 = sand.u32 %s438, 1
          %s1930 = scalar_lea.sflag [#allocation4], %s1929
          %s1931 = sand.u32 %s438, 1
          %s1932 = smul.addr %s1931, 8
          %s1933 = scalar_lea.vmem [#allocation16], %s1932
          %1934 = dma.done %s1930, 128
        $region136: #{tpu_custom_call.1} parent=131 // pred_fallthru
          _
      $region132: #{tpu_custom_call.1} parent=5 // pred_fallthru
        _
    $region6: #{tpu_custom_call.1} parent=1 // loop_footer
      %s40 = sadd.s32 1, %s36
    $region7: #{tpu_custom_call.1} parent=1 // loop_footer_branch
      %35 = sbr.rel target = $region3
    $region8: #{tpu_custom_call.1} parent=1 // loop_exit
      _
    %1935 = vsyncpa [#allocation3], 1
    %s1936 = scalar_lea.sflag [#allocation3], 1
    %1937 = vsyncpa %s1936, 1
    %1938 = vsyncpa [#allocation6], 1
    %s1939 = scalar_lea.sflag [#allocation6], 1
    %1940 = vsyncpa %s1939, 1
    %1941 = vsyncpa [#allocation9], 1
    %1942 = vsyncpa [#allocation12], 1
    %1943 = vsyncpa [#allocation15], 1
    %1944 = vsyncpa [#allocation4], 1
    %s1945 = scalar_lea.sflag [#allocation4], 1
    %1946 = vsyncpa %s1945, 1

</llo_original>
